<compile_context>
chip_gen: v7x
topology: tpu7x:2x2x1
jax: 0.10.0
libtpu: 0.0.40
codegen_flags: <defaults>
</compile_context>

<pallas_src>
import jax
import jax.numpy as jnp
from jax.experimental import pallas as pl
from jax.experimental.pallas import tpu as pltpu


H1 = 128       # fc1 out
H2_PAD = 128   # fc2 out padded 64 -> 128 (full lane tile)
OUT_PAD = 128  # fc3 out padded 7 -> 128 (lane-dense stores)


def _round_up(x, m):
    return ((x + m - 1) // m) * m


def mlp_kernel(x_ref, w1_ref, b1_ref, w2_ref, b2_ref, w3_ref, b3_ref, o_ref):
    # Cast activations to bf16 in VMEM (input travels HBM->VMEM as f32, no extra HBM pass).
    x = x_ref[...].astype(jnp.bfloat16)
    # Layer 1: (TM, K)bf16 @ (K, 128)bf16 -> f32 acc, + bias, ReLU (epilogue in f32)
    h1 = jnp.dot(x, w1_ref[...], preferred_element_type=jnp.float32)
    h1 = jnp.maximum(h1 + b1_ref[...], 0.0)
    # Layer 2: (TM, 128) @ (128, 128-padded); padded lanes stay exactly 0 through ReLU
    h2 = jnp.dot(h1.astype(jnp.bfloat16), w2_ref[...],
                 preferred_element_type=jnp.float32)
    h2 = jnp.maximum(h2 + b2_ref[...], 0.0)
    # Layer 3: (TM, 128-padded) @ (128-padded, 128-padded); zero rows of w3 kill padded lanes
    out = jnp.dot(h2.astype(jnp.bfloat16), w3_ref[...],
                  preferred_element_type=jnp.float32) + b3_ref[...]
    o_ref[...] = out.astype(o_ref.dtype)


def _choose_tm_and_vmem(b_work, K):
    """Generation-aware batch-tile / VMEM-limit selection."""
    try:
        vmem_cap = int(pltpu.get_tpu_info().vmem_capacity_bytes)
    except Exception:
        vmem_cap = 128 << 20  # v5e/v6e default
    budget = (vmem_cap * 3) // 4          # ~48 MiB on v7x, ~96 MiB on v5e/v6e
    # Resident operands (bf16 weights + f32 biases); count x2 in case single-buffering
    # (pl.Buffered(1)) is unavailable and the compiler double-buffers them anyway.
    weight_bytes = (K * H1 + H1 * H2_PAD + H2_PAD * OUT_PAD) * 2 \
                   + (H1 + H2_PAD + OUT_PAD) * 4
    # Per batch-row VMEM: double-buffered f32 activations + double-buffered f32 output.
    per_row = 2 * K * 4 + 2 * OUT_PAD * 4
    tm_fit = max((budget - 2 * weight_bytes) // per_row, 8)
    tm = min(1024, int(tm_fit), b_work)
    # Guarantee >= 2 batch tiles when the batch allows it so both v7x TCs get work
    # (extra grid step costs ~0.35us on single-TC v5e/v6e — negligible).
    if b_work >= 16:
        tm = min(tm, _round_up(-(-b_work // 2), 8))
    tm = max((tm // 8) * 8, 8)
    return tm, int(budget)


def mlp_forward(x_flat, w1, b1, w2, b2, w3, b3):
    """x_flat: (B, K) float32. Weights are (in, out) [transposed vs PyTorch]; biases (1, out)."""
    B, K = x_flat.shape
    h2 = w2.shape[1]       # 64
    out_dim = w3.shape[1]  # 7

    # --- pad fc2/fc3 widths to full 128-lane tiles; zeros are exact through ReLU/matmul ---
    w1c = w1.astype(jnp.bfloat16)
    b1c = b1.astype(jnp.float32)
    w2p = jnp.pad(w2.astype(jnp.bfloat16), ((0, 0), (0, H2_PAD - h2)))
    b2p = jnp.pad(b2.astype(jnp.float32), ((0, 0), (0, H2_PAD - h2)))
    w3p = jnp.pad(w3.astype(jnp.bfloat16), ((0, H2_PAD - h2), (0, OUT_PAD - out_dim)))
    b3p = jnp.pad(b3.astype(jnp.float32), ((0, 0), (0, OUT_PAD - out_dim)))

    # --- batch: only pad to 8 sublanes when needed (no pad at all when B % 8 == 0) ---
    b_work = _round_up(max(B, 1), 8)
    x_in = x_flat if b_work == B else jnp.pad(x_flat, ((0, b_work - B), (0, 0)))

    tm, vmem_limit = _choose_tm_and_vmem(b_work, K)
    nb = pl.cdiv(b_work, tm)  # ragged last tile is masked by Pallas

    flops = 2 * b_work * (K * H1 + H1 * H2_PAD + H2_PAD * OUT_PAD)
    bytes_accessed = (b_work * K * 4                                       # x (f32, read once)
                      + (K * H1 + H1 * H2_PAD + H2_PAD * OUT_PAD) * 2      # bf16 weights
                      + (H1 + H2_PAD + OUT_PAD) * 4                        # f32 biases
                      + b_work * OUT_PAD * 4)                              # f32 output

    def run(single_buffer_weights):
        resident = {"pipeline_mode": pl.Buffered(1)} if single_buffer_weights else {}
        grid_spec = pltpu.PrefetchScalarGridSpec(
            num_scalar_prefetch=0,
            grid=(nb,),
            in_specs=[
                pl.BlockSpec((tm, K), lambda i: (i, 0)),                     # x: tiled over batch
                pl.BlockSpec((K, H1), lambda i: (0, 0), **resident),         # w1 (resident)
                pl.BlockSpec((1, H1), lambda i: (0, 0), **resident),         # b1
                pl.BlockSpec((H1, H2_PAD), lambda i: (0, 0), **resident),    # w2 (lane-padded)
                pl.BlockSpec((1, H2_PAD), lambda i: (0, 0), **resident),     # b2
                pl.BlockSpec((H2_PAD, OUT_PAD), lambda i: (0, 0), **resident),  # w3
                pl.BlockSpec((1, OUT_PAD), lambda i: (0, 0), **resident),       # b3
            ],
            out_specs=pl.BlockSpec((tm, OUT_PAD), lambda i: (i, 0)),
        )
        return pl.pallas_call(
            mlp_kernel,
            out_shape=jax.ShapeDtypeStruct((b_work, OUT_PAD), jnp.float32),
            grid_spec=grid_spec,
            compiler_params=pltpu.CompilerParams(
                dimension_semantics=("parallel",),   # batch tiles shard across v7x TCs
                vmem_limit_bytes=vmem_limit,
            ),
            cost_estimate=pl.CostEstimate(
                flops=flops, transcendentals=0, bytes_accessed=int(bytes_accessed)),
        )(x_in, w1c, b1c, w2p, b2p, w3p, b3p)

    try:
        out_padded = run(True)
    except Exception:
        # pl.Buffered(1) not accepted on this jax version -> default double buffering.
        out_padded = run(False)

    return out_padded[:B, :out_dim]


def init_linear(key, fan_in, fan_out):
    """PyTorch nn.Linear default init: U(-1/sqrt(fan_in), 1/sqrt(fan_in))."""
    kw, kb = jax.random.split(key)
    bound = 1.0 / jnp.sqrt(float(fan_in))
    # Stored as (in, out) — i.e. transposed vs. PyTorch's (out, in) weight.
    w = jax.random.uniform(kw, (fan_in, fan_out), jnp.float32, -bound, bound)
    b = jax.random.uniform(kb, (1, fan_out), jnp.float32, -bound, bound)
    return w, b


if __name__ == "__main__":
    # Input NCHW; the forward flattens to (B, C*H*W), so fc1.in_features == C*H*W.
    batch, c, h, w = 2, 4, 16, 16
    channel = c * h * w  # 1024

    key = jax.random.PRNGKey(0)
    kx, k1, k2, k3 = jax.random.split(key, 4)

    x = jax.random.normal(kx, (batch, c, h, w), jnp.float32)  # NCHW
    w1, b1 = init_linear(k1, channel, 128)
    w2, b2 = init_linear(k2, 128, 64)
    w3, b3 = init_linear(k3, 64, 7)

    # Glue: flatten NCHW -> (B, C*H*W), same as x.view(x.size(0), -1).
    x_flat = x.reshape(batch, -1)

    out = mlp_forward(x_flat, w1, b1, w2, b2, w3, b3)
    out = jax.block_until_ready(out)
    assert out.shape == (batch, 7)

    # Reference in plain JAX, mimicking the kernel's bf16 operands / f32 accumulation.
    rnd = lambda a: a.astype(jnp.bfloat16).astype(jnp.float32)
    hdot = lambda a, b: jax.lax.dot(a, b, precision=jax.lax.Precision.HIGHEST)
    r1 = jnp.maximum(hdot(rnd(x_flat), rnd(w1)) + b1, 0.0)
    r2 = jnp.maximum(hdot(rnd(r1), rnd(w2)) + b2, 0.0)
    ref = hdot(rnd(r2), rnd(w3)) + b3
    assert jnp.allclose(out, ref, atol=2e-3, rtol=2e-3), (
        f"max abs err {jnp.max(jnp.abs(out - ref))}")

    print("KERNEL_OK")
</pallas_src>

<mosaic_0001>
module attributes {stable_mosaic.version = 11 : i64} {
  func.func @mlp_kernel(%arg0: i32, %arg1: memref<8x1024xf32, #tpu.memory_space<vmem>>, %arg2: memref<1024x128xbf16, #tpu.memory_space<vmem>>, %arg3: memref<1x128xf32, #tpu.memory_space<vmem>>, %arg4: memref<128x128xbf16, #tpu.memory_space<vmem>>, %arg5: memref<1x128xf32, #tpu.memory_space<vmem>>, %arg6: memref<128x128xbf16, #tpu.memory_space<vmem>>, %arg7: memref<1x128xf32, #tpu.memory_space<vmem>>, %arg8: memref<8x128xf32, #tpu.memory_space<vmem>>) attributes {dimension_semantics = [#tpu.dimension_semantics<parallel>], iteration_bounds = array<i64: 1>, scalar_prefetch = 0 : i64, scratch_operands = 0 : i64, tpu.core_type = #tpu.core_type<tc>, window_params = [{transform_indices = @transform_0, window_bounds = array<i64: 8, 1024>}, {pipeline_mode = #tpu.pipeline_mode<synchronous>, transform_indices = @transform_1, window_bounds = array<i64: 1024, 128>}, {pipeline_mode = #tpu.pipeline_mode<synchronous>, transform_indices = @transform_2, window_bounds = array<i64: 1, 128>}, {pipeline_mode = #tpu.pipeline_mode<synchronous>, transform_indices = @transform_3, window_bounds = array<i64: 128, 128>}, {pipeline_mode = #tpu.pipeline_mode<synchronous>, transform_indices = @transform_4, window_bounds = array<i64: 1, 128>}, {pipeline_mode = #tpu.pipeline_mode<synchronous>, transform_indices = @transform_5, window_bounds = array<i64: 128, 128>}, {pipeline_mode = #tpu.pipeline_mode<synchronous>, transform_indices = @transform_6, window_bounds = array<i64: 1, 128>}, {transform_indices = @transform_7, window_bounds = array<i64: 8, 128>}]} {
    %c0 = arith.constant 0 : index
    %c0_0 = arith.constant 0 : index
    %0 = vector.load %arg1[%c0, %c0_0] : memref<8x1024xf32, #tpu.memory_space<vmem>>, vector<8x1024xf32>
    %1 = arith.truncf %0 : vector<8x1024xf32> to vector<8x1024xbf16>
    %c0_1 = arith.constant 0 : index
    %c0_2 = arith.constant 0 : index
    %2 = vector.load %arg2[%c0_1, %c0_2] : memref<1024x128xbf16, #tpu.memory_space<vmem>>, vector<1024x128xbf16>
    %cst = arith.constant dense<0.000000e+00> : vector<8x128xf32>
    %3 = tpu.matmul %1, %2, %cst {dimension_numbers = #tpu.dot_dimension_numbers<[1], [0], [0], [1], [0, 0, 1, 1], [], []>} : vector<8x1024xbf16>, vector<1024x128xbf16>, vector<8x128xf32> -> vector<8x128xf32>
    %c0_3 = arith.constant 0 : index
    %c0_4 = arith.constant 0 : index
    %4 = vector.load %arg3[%c0_3, %c0_4] : memref<1x128xf32, #tpu.memory_space<vmem>>, vector<1x128xf32>
    %5 = vector.broadcast %4 : vector<1x128xf32> to vector<8x128xf32>
    %6 = arith.addf %3, %5 : vector<8x128xf32>
    %cst_5 = arith.constant 0.000000e+00 : f32
    %7 = vector.broadcast %cst_5 : f32 to vector<8x128xf32>
    %8 = arith.maximumf %6, %7 : vector<8x128xf32>
    %9 = arith.truncf %8 : vector<8x128xf32> to vector<8x128xbf16>
    %c0_6 = arith.constant 0 : index
    %c0_7 = arith.constant 0 : index
    %10 = vector.load %arg4[%c0_6, %c0_7] : memref<128x128xbf16, #tpu.memory_space<vmem>>, vector<128x128xbf16>
    %cst_8 = arith.constant dense<0.000000e+00> : vector<8x128xf32>
    %11 = tpu.matmul %9, %10, %cst_8 {dimension_numbers = #tpu.dot_dimension_numbers<[1], [0], [0], [1], [0, 0, 1, 1], [], []>} : vector<8x128xbf16>, vector<128x128xbf16>, vector<8x128xf32> -> vector<8x128xf32>
    %c0_9 = arith.constant 0 : index
    %c0_10 = arith.constant 0 : index
    %12 = vector.load %arg5[%c0_9, %c0_10] : memref<1x128xf32, #tpu.memory_space<vmem>>, vector<1x128xf32>
    %13 = vector.broadcast %12 : vector<1x128xf32> to vector<8x128xf32>
    %14 = arith.addf %11, %13 : vector<8x128xf32>
    %cst_11 = arith.constant 0.000000e+00 : f32
    %15 = vector.broadcast %cst_11 : f32 to vector<8x128xf32>
    %16 = arith.maximumf %14, %15 : vector<8x128xf32>
    %17 = arith.truncf %16 : vector<8x128xf32> to vector<8x128xbf16>
    %c0_12 = arith.constant 0 : index
    %c0_13 = arith.constant 0 : index
    %18 = vector.load %arg6[%c0_12, %c0_13] : memref<128x128xbf16, #tpu.memory_space<vmem>>, vector<128x128xbf16>
    %cst_14 = arith.constant dense<0.000000e+00> : vector<8x128xf32>
    %19 = tpu.matmul %17, %18, %cst_14 {dimension_numbers = #tpu.dot_dimension_numbers<[1], [0], [0], [1], [0, 0, 1, 1], [], []>} : vector<8x128xbf16>, vector<128x128xbf16>, vector<8x128xf32> -> vector<8x128xf32>
    %c0_15 = arith.constant 0 : index
    %c0_16 = arith.constant 0 : index
    %20 = vector.load %arg7[%c0_15, %c0_16] : memref<1x128xf32, #tpu.memory_space<vmem>>, vector<1x128xf32>
    %21 = vector.broadcast %20 : vector<1x128xf32> to vector<8x128xf32>
    %22 = arith.addf %19, %21 : vector<8x128xf32>
    %c0_17 = arith.constant 0 : index
    %c0_18 = arith.constant 0 : index
    %23 = vector.load %arg8[%c0_17, %c0_18] : memref<8x128xf32, #tpu.memory_space<vmem>>, vector<8x128xf32>
    tpu.vector_store %arg8[%c0_17, %c0_18], %22 {strides = array<i32>} : memref<8x128xf32, #tpu.memory_space<vmem>>, vector<8x128xf32>,
    return
  }
  func.func @transform_0(%arg0: i32) -> (i32, i32) {
    %c0_i32 = arith.constant 0 : i32
    %c0_i32_0 = arith.constant 0 : i32
    return %arg0, %c0_i32 : i32, i32
  }
  func.func @transform_1(%arg0: i32) -> (i32, i32) {
    %c0_i32 = arith.constant 0 : i32
    %c0_i32_0 = arith.constant 0 : i32
    %c0_i32_1 = arith.constant 0 : i32
    return %c0_i32, %c0_i32_0 : i32, i32
  }
  func.func @transform_2(%arg0: i32) -> (i32, i32) {
    %c0_i32 = arith.constant 0 : i32
    %c0_i32_0 = arith.constant 0 : i32
    %c0_i32_1 = arith.constant 0 : i32
    return %c0_i32, %c0_i32_0 : i32, i32
  }
  func.func @transform_3(%arg0: i32) -> (i32, i32) {
    %c0_i32 = arith.constant 0 : i32
    %c0_i32_0 = arith.constant 0 : i32
    %c0_i32_1 = arith.constant 0 : i32
    return %c0_i32, %c0_i32_0 : i32, i32
  }
  func.func @transform_4(%arg0: i32) -> (i32, i32) {
    %c0_i32 = arith.constant 0 : i32
    %c0_i32_0 = arith.constant 0 : i32
    %c0_i32_1 = arith.constant 0 : i32
    return %c0_i32, %c0_i32_0 : i32, i32
  }
  func.func @transform_5(%arg0: i32) -> (i32, i32) {
    %c0_i32 = arith.constant 0 : i32
    %c0_i32_0 = arith.constant 0 : i32
    %c0_i32_1 = arith.constant 0 : i32
    return %c0_i32, %c0_i32_0 : i32, i32
  }
  func.func @transform_6(%arg0: i32) -> (i32, i32) {
    %c0_i32 = arith.constant 0 : i32
    %c0_i32_0 = arith.constant 0 : i32
    %c0_i32_1 = arith.constant 0 : i32
    return %c0_i32, %c0_i32_0 : i32, i32
  }
  func.func @transform_7(%arg0: i32) -> (i32, i32) {
    %c0_i32 = arith.constant 0 : i32
    %c0_i32_0 = arith.constant 0 : i32
    return %arg0, %c0_i32 : i32, i32
  }
}

module attributes {stable_mosaic.version = 11 : i64} {
  func.func @mlp_kernel(%arg0: i32, %arg1: memref<8x1024xf32, #tpu.memory_space<vmem>>, %arg2: memref<1024x128xbf16, #tpu.memory_space<vmem>>, %arg3: memref<1x128xf32, #tpu.memory_space<vmem>>, %arg4: memref<128x128xbf16, #tpu.memory_space<vmem>>, %arg5: memref<1x128xf32, #tpu.memory_space<vmem>>, %arg6: memref<128x128xbf16, #tpu.memory_space<vmem>>, %arg7: memref<1x128xf32, #tpu.memory_space<vmem>>, %arg8: memref<8x128xf32, #tpu.memory_space<vmem>>) attributes {dimension_semantics = [#tpu.dimension_semantics<parallel>], iteration_bounds = array<i64: 1>, scalar_prefetch = 0 : i64, scratch_operands = 0 : i64, tpu.core_type = #tpu.core_type<tc>, window_params = [{transform_indices = @transform_0, window_bounds = array<i64: 8, 1024>}, {pipeline_mode = #tpu.pipeline_mode<synchronous>, transform_indices = @transform_1, window_bounds = array<i64: 1024, 128>}, {pipeline_mode = #tpu.pipeline_mode<synchronous>, transform_indices = @transform_2, window_bounds = array<i64: 1, 128>}, {pipeline_mode = #tpu.pipeline_mode<synchronous>, transform_indices = @transform_3, window_bounds = array<i64: 128, 128>}, {pipeline_mode = #tpu.pipeline_mode<synchronous>, transform_indices = @transform_4, window_bounds = array<i64: 1, 128>}, {pipeline_mode = #tpu.pipeline_mode<synchronous>, transform_indices = @transform_5, window_bounds = array<i64: 128, 128>}, {pipeline_mode = #tpu.pipeline_mode<synchronous>, transform_indices = @transform_6, window_bounds = array<i64: 1, 128>}, {transform_indices = @transform_7, window_bounds = array<i64: 8, 128>}]} {
    %c0 = arith.constant 0 : index
    %c0_0 = arith.constant 0 : index
    %0 = vector.load %arg1[%c0, %c0_0] : memref<8x1024xf32, #tpu.memory_space<vmem>>, vector<8x1024xf32>
    %1 = arith.truncf %0 : vector<8x1024xf32> to vector<8x1024xbf16>
    %c0_1 = arith.constant 0 : index
    %c0_2 = arith.constant 0 : index
    %2 = vector.load %arg2[%c0_1, %c0_2] : memref<1024x128xbf16, #tpu.memory_space<vmem>>, vector<1024x128xbf16>
    %cst = arith.constant dense<0.000000e+00> : vector<8x128xf32>
    %3 = tpu.matmul %1, %2, %cst {dimension_numbers = #tpu.dot_dimension_numbers<[1], [0], [0], [1], [0, 0, 1, 1], [], []>} : vector<8x1024xbf16>, vector<1024x128xbf16>, vector<8x128xf32> -> vector<8x128xf32>
    %c0_3 = arith.constant 0 : index
    %c0_4 = arith.constant 0 : index
    %4 = vector.load %arg3[%c0_3, %c0_4] : memref<1x128xf32, #tpu.memory_space<vmem>>, vector<1x128xf32>
    %5 = vector.broadcast %4 : vector<1x128xf32> to vector<8x128xf32>
    %6 = arith.addf %3, %5 : vector<8x128xf32>
    %cst_5 = arith.constant 0.000000e+00 : f32
    %7 = vector.broadcast %cst_5 : f32 to vector<8x128xf32>
    %8 = arith.maximumf %6, %7 : vector<8x128xf32>
    %9 = arith.truncf %8 : vector<8x128xf32> to vector<8x128xbf16>
    %c0_6 = arith.constant 0 : index
    %c0_7 = arith.constant 0 : index
    %10 = vector.load %arg4[%c0_6, %c0_7] : memref<128x128xbf16, #tpu.memory_space<vmem>>, vector<128x128xbf16>
    %cst_8 = arith.constant dense<0.000000e+00> : vector<8x128xf32>
    %11 = tpu.matmul %9, %10, %cst_8 {dimension_numbers = #tpu.dot_dimension_numbers<[1], [0], [0], [1], [0, 0, 1, 1], [], []>} : vector<8x128xbf16>, vector<128x128xbf16>, vector<8x128xf32> -> vector<8x128xf32>
    %c0_9 = arith.constant 0 : index
    %c0_10 = arith.constant 0 : index
    %12 = vector.load %arg5[%c0_9, %c0_10] : memref<1x128xf32, #tpu.memory_space<vmem>>, vector<1x128xf32>
    %13 = vector.broadcast %12 : vector<1x128xf32> to vector<8x128xf32>
    %14 = arith.addf %11, %13 : vector<8x128xf32>
    %cst_11 = arith.constant 0.000000e+00 : f32
    %15 = vector.broadcast %cst_11 : f32 to vector<8x128xf32>
    %16 = arith.maximumf %14, %15 : vector<8x128xf32>
    %17 = arith.truncf %16 : vector<8x128xf32> to vector<8x128xbf16>
    %c0_12 = arith.constant 0 : index
    %c0_13 = arith.constant 0 : index
    %18 = vector.load %arg6[%c0_12, %c0_13] : memref<128x128xbf16, #tpu.memory_space<vmem>>, vector<128x128xbf16>
    %cst_14 = arith.constant dense<0.000000e+00> : vector<8x128xf32>
    %19 = tpu.matmul %17, %18, %cst_14 {dimension_numbers = #tpu.dot_dimension_numbers<[1], [0], [0], [1], [0, 0, 1, 1], [], []>} : vector<8x128xbf16>, vector<128x128xbf16>, vector<8x128xf32> -> vector<8x128xf32>
    %c0_15 = arith.constant 0 : index
    %c0_16 = arith.constant 0 : index
    %20 = vector.load %arg7[%c0_15, %c0_16] : memref<1x128xf32, #tpu.memory_space<vmem>>, vector<1x128xf32>
    %21 = vector.broadcast %20 : vector<1x128xf32> to vector<8x128xf32>
    %22 = arith.addf %19, %21 : vector<8x128xf32>
    %c0_17 = arith.constant 0 : index
    %c0_18 = arith.constant 0 : index
    %23 = vector.load %arg8[%c0_17, %c0_18] : memref<8x128xf32, #tpu.memory_space<vmem>>, vector<8x128xf32>
    tpu.vector_store %arg8[%c0_17, %c0_18], %22 {strides = array<i32>} : memref<8x128xf32, #tpu.memory_space<vmem>>, vector<8x128xf32>,
    return
  }
  func.func @transform_0(%arg0: i32) -> (i32, i32) {
    %c0_i32 = arith.constant 0 : i32
    %c0_i32_0 = arith.constant 0 : i32
    return %arg0, %c0_i32 : i32, i32
  }
  func.func @transform_1(%arg0: i32) -> (i32, i32) {
    %c0_i32 = arith.constant 0 : i32
    %c0_i32_0 = arith.constant 0 : i32
    %c0_i32_1 = arith.constant 0 : i32
    return %c0_i32, %c0_i32_0 : i32, i32
  }
  func.func @transform_2(%arg0: i32) -> (i32, i32) {
    %c0_i32 = arith.constant 0 : i32
    %c0_i32_0 = arith.constant 0 : i32
    %c0_i32_1 = arith.constant 0 : i32
    return %c0_i32, %c0_i32_0 : i32, i32
  }
  func.func @transform_3(%arg0: i32) -> (i32, i32) {
    %c0_i32 = arith.constant 0 : i32
    %c0_i32_0 = arith.constant 0 : i32
    %c0_i32_1 = arith.constant 0 : i32
    return %c0_i32, %c0_i32_0 : i32, i32
  }
  func.func @transform_4(%arg0: i32) -> (i32, i32) {
    %c0_i32 = arith.constant 0 : i32
    %c0_i32_0 = arith.constant 0 : i32
    %c0_i32_1 = arith.constant 0 : i32
    return %c0_i32, %c0_i32_0 : i32, i32
  }
  func.func @transform_5(%arg0: i32) -> (i32, i32) {
    %c0_i32 = arith.constant 0 : i32
    %c0_i32_0 = arith.constant 0 : i32
    %c0_i32_1 = arith.constant 0 : i32
    return %c0_i32, %c0_i32_0 : i32, i32
  }
  func.func @transform_6(%arg0: i32) -> (i32, i32) {
    %c0_i32 = arith.constant 0 : i32
    %c0_i32_0 = arith.constant 0 : i32
    %c0_i32_1 = arith.constant 0 : i32
    return %c0_i32, %c0_i32_0 : i32, i32
  }
  func.func @transform_7(%arg0: i32) -> (i32, i32) {
    %c0_i32 = arith.constant 0 : i32
    %c0_i32_0 = arith.constant 0 : i32
    return %arg0, %c0_i32 : i32, i32
  }
}

</mosaic_0001>

<llo_original>
// kernel: tpu_custom_call.1
$region0: #{tpu_custom_call.1}
  #allocation0 [shape = 'u32[]', space=smem, size = 0x4, offset = 0x4, fixed_abs, tag = 'smem constant byte address 0x4 - core index']
  #allocation1 [shape = 'u32[144,128]{1,0:T(1,128)}', space=vmem, size = 0x12000, scoped, tag = 'internal scratch']
  %s0 = inlined_call_operand.hbm [shape: f32[8,1024], index: 0, kind: input, shape index: {}]
  %s1 = inlined_call_operand.hbm [shape: bf16[1024,128], index: 1, kind: input, shape index: {}]
  %s2 = inlined_call_operand.hbm [shape: f32[1,128], index: 2, kind: input, shape index: {}]
  %s3 = inlined_call_operand.hbm [shape: bf16[128,128], index: 3, kind: input, shape index: {}]
  %s4 = inlined_call_operand.hbm [shape: f32[1,128], index: 4, kind: input, shape index: {}]
  %s5 = inlined_call_operand.hbm [shape: bf16[128,128], index: 5, kind: input, shape index: {}]
  %s6 = inlined_call_operand.hbm [shape: f32[1,128], index: 6, kind: input, shape index: {}]
  %s7 = inlined_call_operand.hbm [shape: f32[8,128], index: 7, kind: output, shape index: {}]
  %s8 = sld [smem:[#allocation0]]
  $region66: #{tpu_custom_call.1} parent=0
    _
  %s10 = ssub.s32 1, %s8
  %s11 = scalar_select 0, %s10, %s8
  $region1: #{tpu_custom_call.1} parent=0
    #allocation2 [shape = 'u8[32768]{0}', space=vmem, size = 0x8000, scoped, tag = 'input window, operand 0, single buffered']
    #allocation3 [shape = 's32[1]{0}', space=sflag, size = 0x4, scoped, tag = 'scoped memory for tpu_custom_call.1']
    #allocation4 [shape = 's32[1]{0}', space=sflag, size = 0x4, scoped, tag = 'scoped memory for tpu_custom_call.1']
    #allocation5 [shape = 'u8[262144]{0}', space=vmem, size = 0x40000, scoped, tag = 'input window, operand 1, single buffered']
    #allocation6 [shape = 's32[1]{0}', space=sflag, size = 0x4, scoped, tag = 'scoped memory for tpu_custom_call.1']
    #allocation7 [shape = 'u8[512]{0}', space=vmem, size = 0x400, scoped, tag = 'input window, operand 2, single buffered']
    #allocation8 [shape = 'u8[32768]{0}', space=vmem, size = 0x8000, scoped, tag = 'input window, operand 3, single buffered']
    #allocation9 [shape = 's32[1]{0}', space=sflag, size = 0x4, scoped, tag = 'scoped memory for tpu_custom_call.1']
    #allocation10 [shape = 'u8[512]{0}', space=vmem, size = 0x400, scoped, tag = 'input window, operand 4, single buffered']
    #allocation11 [shape = 'u8[32768]{0}', space=vmem, size = 0x8000, scoped, tag = 'input window, operand 5, single buffered']
    #allocation12 [shape = 's32[1]{0}', space=sflag, size = 0x4, scoped, tag = 'scoped memory for tpu_custom_call.1']
    #allocation13 [shape = 'u8[512]{0}', space=vmem, size = 0x400, scoped, tag = 'input window, operand 6, single buffered']
    #allocation14 [shape = 'u8[4096]{0}', space=vmem, size = 0x1000, scoped, tag = 'output window, operand 0, single buffered']
    %12 = vsyncpa [#allocation3], 0
    %13 = vsyncpa [#allocation6], 0
    %14 = vsyncpa [#allocation9], 0
    %15 = vsyncpa [#allocation12], 0
    %16 = vsyncpa [#allocation4], 0
    // Predicated region
    $region2: #{tpu_custom_call.1} parent=1 // pred_check
      _
    $region3: #{tpu_custom_call.1} parent=1 // pred_check_branch
      %18 = sbr.rel (0) target = $region5
    $region4: #{tpu_custom_call.1} parent=1 // pred_region
      %s20 = ssub.s32 1024, 1024
      %21 = vsyncadd [#allocation3], %s20
      %s23 = sshll.u32 [#allocation2], 4
      %s24 = int_to_ptr.vmem [resolvable:$true] %s23
      %26 = dma.hbm_to_vmem [thread:$0]  %s0, 1024, %s24, [#allocation3]
    $region5: #{tpu_custom_call.1} parent=1 // pred_fallthru
      _
    // Predicated region
    $region6: #{tpu_custom_call.1} parent=1 // pred_check
      _
    $region7: #{tpu_custom_call.1} parent=1 // pred_check_branch
      %28 = sbr.rel (0) target = $region9
    $region8: #{tpu_custom_call.1} parent=1 // pred_region
      %s30 = ssub.s32 8192, 8192
      %31 = vsyncadd [#allocation6], %s30
      %s32 = sshll.u32 [#allocation5], 4
      %s33 = int_to_ptr.vmem [resolvable:$true] %s32
      %38 = dma.hbm_to_vmem [thread:$0]  %s1, 8192, %s33, [#allocation6], 64, 64, 4
    $region9: #{tpu_custom_call.1} parent=1 // pred_fallthru
      _
    // Predicated region
    $region10: #{tpu_custom_call.1} parent=1 // pred_check
      _
    $region11: #{tpu_custom_call.1} parent=1 // pred_check_branch
      %40 = sbr.rel (0) target = $region13
    $region12: #{tpu_custom_call.1} parent=1 // pred_region
      %s42 = ssub.s32 16, 16
      %43 = vsyncadd [#allocation6], %s42
      %s45 = sshll.u32 [#allocation7], 4
      %s46 = int_to_ptr.vmem [resolvable:$true] %s45
      %48 = dma.hbm_to_vmem [thread:$0]  %s2, 16, %s46, [#allocation6]
    $region13: #{tpu_custom_call.1} parent=1 // pred_fallthru
      _
    // Predicated region
    $region14: #{tpu_custom_call.1} parent=1 // pred_check
      _
    $region15: #{tpu_custom_call.1} parent=1 // pred_check_branch
      %50 = sbr.rel (0) target = $region17
    $region16: #{tpu_custom_call.1} parent=1 // pred_region
      %s52 = ssub.s32 1024, 1024
      %53 = vsyncadd [#allocation9], %s52
      %s54 = sshll.u32 [#allocation8], 4
      %s55 = int_to_ptr.vmem [resolvable:$true] %s54
      %60 = dma.hbm_to_vmem [thread:$0]  %s3, 1024, %s55, [#allocation9], 64, 64, 4
    $region17: #{tpu_custom_call.1} parent=1 // pred_fallthru
      _
    // Predicated region
    $region18: #{tpu_custom_call.1} parent=1 // pred_check
      _
    $region19: #{tpu_custom_call.1} parent=1 // pred_check_branch
      %62 = sbr.rel (0) target = $region21
    $region20: #{tpu_custom_call.1} parent=1 // pred_region
      %s64 = ssub.s32 16, 16
      %65 = vsyncadd [#allocation9], %s64
      %s67 = sshll.u32 [#allocation10], 4
      %s68 = int_to_ptr.vmem [resolvable:$true] %s67
      %70 = dma.hbm_to_vmem [thread:$0]  %s4, 16, %s68, [#allocation9]
    $region21: #{tpu_custom_call.1} parent=1 // pred_fallthru
      _
    // Predicated region
    $region22: #{tpu_custom_call.1} parent=1 // pred_check
      _
    $region23: #{tpu_custom_call.1} parent=1 // pred_check_branch
      %72 = sbr.rel (0) target = $region25
    $region24: #{tpu_custom_call.1} parent=1 // pred_region
      %s74 = ssub.s32 1024, 1024
      %75 = vsyncadd [#allocation12], %s74
      %s76 = sshll.u32 [#allocation11], 4
      %s77 = int_to_ptr.vmem [resolvable:$true] %s76
      %82 = dma.hbm_to_vmem [thread:$0]  %s5, 1024, %s77, [#allocation12], 64, 64, 4
    $region25: #{tpu_custom_call.1} parent=1 // pred_fallthru
      _
    // Predicated region
    $region26: #{tpu_custom_call.1} parent=1 // pred_check
      _
    $region27: #{tpu_custom_call.1} parent=1 // pred_check_branch
      %84 = sbr.rel (0) target = $region29
    $region28: #{tpu_custom_call.1} parent=1 // pred_region
      %s86 = ssub.s32 16, 16
      %87 = vsyncadd [#allocation12], %s86
      %s89 = sshll.u32 [#allocation13], 4
      %s90 = int_to_ptr.vmem [resolvable:$true] %s89
      %92 = dma.hbm_to_vmem [thread:$0]  %s6, 16, %s90, [#allocation12]
    $region29: #{tpu_custom_call.1} parent=1 // pred_fallthru
      _
    // Predicated region
    $region30: #{tpu_custom_call.1} parent=1 // pred_check
      _
    $region31: #{tpu_custom_call.1} parent=1 // pred_check_branch
      %94 = sbr.rel (0) target = $region33
    $region32: #{tpu_custom_call.1} parent=1 // pred_region
      %95 = dma.done [#allocation3], 1024
    $region33: #{tpu_custom_call.1} parent=1 // pred_fallthru
      _
    // Predicated region
    $region34: #{tpu_custom_call.1} parent=1 // pred_check
      _
    $region35: #{tpu_custom_call.1} parent=1 // pred_check_branch
      %97 = sbr.rel (0) target = $region37
    $region36: #{tpu_custom_call.1} parent=1 // pred_region
      %98 = dma.done [#allocation6], 8192
    $region37: #{tpu_custom_call.1} parent=1 // pred_fallthru
      _
    // Predicated region
    $region38: #{tpu_custom_call.1} parent=1 // pred_check
      _
    $region39: #{tpu_custom_call.1} parent=1 // pred_check_branch
      %100 = sbr.rel (0) target = $region41
    $region40: #{tpu_custom_call.1} parent=1 // pred_region
      %101 = dma.done [#allocation6], 16
    $region41: #{tpu_custom_call.1} parent=1 // pred_fallthru
      _
    // Predicated region
    $region42: #{tpu_custom_call.1} parent=1 // pred_check
      _
    $region43: #{tpu_custom_call.1} parent=1 // pred_check_branch
      %103 = sbr.rel (0) target = $region45
    $region44: #{tpu_custom_call.1} parent=1 // pred_region
      %104 = dma.done [#allocation9], 1024
    $region45: #{tpu_custom_call.1} parent=1 // pred_fallthru
      _
    // Predicated region
    $region46: #{tpu_custom_call.1} parent=1 // pred_check
      _
    $region47: #{tpu_custom_call.1} parent=1 // pred_check_branch
      %106 = sbr.rel (0) target = $region49
    $region48: #{tpu_custom_call.1} parent=1 // pred_region
      %107 = dma.done [#allocation9], 16
    $region49: #{tpu_custom_call.1} parent=1 // pred_fallthru
      _
    // Predicated region
    $region50: #{tpu_custom_call.1} parent=1 // pred_check
      _
    $region51: #{tpu_custom_call.1} parent=1 // pred_check_branch
      %109 = sbr.rel (0) target = $region53
    $region52: #{tpu_custom_call.1} parent=1 // pred_region
      %110 = dma.done [#allocation12], 1024
    $region53: #{tpu_custom_call.1} parent=1 // pred_fallthru
      _
    // Predicated region
    $region54: #{tpu_custom_call.1} parent=1 // pred_check
      _
    $region55: #{tpu_custom_call.1} parent=1 // pred_check_branch
      %112 = sbr.rel (0) target = $region57
    $region56: #{tpu_custom_call.1} parent=1 // pred_region
      %113 = dma.done [#allocation12], 16
    $region57: #{tpu_custom_call.1} parent=1 // pred_fallthru
      _
    %v115 = vld [vmem:[#allocation2] sm:$0xff]
    %v116 = vld [vmem:[#allocation2 + $0x8] sm:$0xff]
    %v117 = vld [vmem:[#allocation2 + $0x10] sm:$0xff]
    %v118 = vld [vmem:[#allocation2 + $0x18] sm:$0xff]
    %v119 = vld [vmem:[#allocation2 + $0x20] sm:$0xff]
    %v120 = vld [vmem:[#allocation2 + $0x28] sm:$0xff]
    %v121 = vld [vmem:[#allocation2 + $0x30] sm:$0xff]
    %v122 = vld [vmem:[#allocation2 + $0x38] sm:$0xff]
    %v123 = vpack.c.bf16 %v115, %v115
    %v124 = vpack.c.bf16 %v116, %v116
    %v125 = vpack.c.bf16 %v117, %v117
    %v126 = vpack.c.bf16 %v118, %v118
    %v127 = vpack.c.bf16 %v119, %v119
    %v128 = vpack.c.bf16 %v120, %v120
    %v129 = vpack.c.bf16 %v121, %v121
    %v130 = vpack.c.bf16 %v122, %v122
    %v131 = vld [vmem:[#allocation5] sm:$0xf]
    %v132 = vld [vmem:[#allocation5 + $0x4] sm:$0xf]
    %v133 = vld [vmem:[#allocation5 + $0x8] sm:$0xf]
    %v134 = vld [vmem:[#allocation5 + $0xc] sm:$0xf]
    %v135 = vld [vmem:[#allocation5 + $0x10] sm:$0xf]
    %v136 = vld [vmem:[#allocation5 + $0x14] sm:$0xf]
    %v137 = vld [vmem:[#allocation5 + $0x18] sm:$0xf]
    %v138 = vld [vmem:[#allocation5 + $0x1c] sm:$0xf]
    %v139 = vld [vmem:[#allocation5 + $0x20] sm:$0xf]
    %v140 = vld [vmem:[#allocation5 + $0x24] sm:$0xf]
    %v141 = vld [vmem:[#allocation5 + $0x28] sm:$0xf]
    %v142 = vld [vmem:[#allocation5 + $0x2c] sm:$0xf]
    %v143 = vld [vmem:[#allocation5 + $0x30] sm:$0xf]
    %v144 = vld [vmem:[#allocation5 + $0x34] sm:$0xf]
    %v145 = vld [vmem:[#allocation5 + $0x38] sm:$0xf]
    %v146 = vld [vmem:[#allocation5 + $0x3c] sm:$0xf]
    %v147 = vld [vmem:[#allocation5 + $0x40] sm:$0xf]
    %v148 = vld [vmem:[#allocation5 + $0x44] sm:$0xf]
    %v149 = vld [vmem:[#allocation5 + $0x48] sm:$0xf]
    %v150 = vld [vmem:[#allocation5 + $0x4c] sm:$0xf]
    %v151 = vld [vmem:[#allocation5 + $0x50] sm:$0xf]
    %v152 = vld [vmem:[#allocation5 + $0x54] sm:$0xf]
    %v153 = vld [vmem:[#allocation5 + $0x58] sm:$0xf]
    %v154 = vld [vmem:[#allocation5 + $0x5c] sm:$0xf]
    %v155 = vld [vmem:[#allocation5 + $0x60] sm:$0xf]
    %v156 = vld [vmem:[#allocation5 + $0x64] sm:$0xf]
    %v157 = vld [vmem:[#allocation5 + $0x68] sm:$0xf]
    %v158 = vld [vmem:[#allocation5 + $0x6c] sm:$0xf]
    %v159 = vld [vmem:[#allocation5 + $0x70] sm:$0xf]
    %v160 = vld [vmem:[#allocation5 + $0x74] sm:$0xf]
    %v161 = vld [vmem:[#allocation5 + $0x78] sm:$0xf]
    %v162 = vld [vmem:[#allocation5 + $0x7c] sm:$0xf]
    %v163 = vld [vmem:[#allocation5 + $0x80] sm:$0xf]
    %v164 = vld [vmem:[#allocation5 + $0x84] sm:$0xf]
    %v165 = vld [vmem:[#allocation5 + $0x88] sm:$0xf]
    %v166 = vld [vmem:[#allocation5 + $0x8c] sm:$0xf]
    %v167 = vld [vmem:[#allocation5 + $0x90] sm:$0xf]
    %v168 = vld [vmem:[#allocation5 + $0x94] sm:$0xf]
    %v169 = vld [vmem:[#allocation5 + $0x98] sm:$0xf]
    %v170 = vld [vmem:[#allocation5 + $0x9c] sm:$0xf]
    %v171 = vld [vmem:[#allocation5 + $0xa0] sm:$0xf]
    %v172 = vld [vmem:[#allocation5 + $0xa4] sm:$0xf]
    %v173 = vld [vmem:[#allocation5 + $0xa8] sm:$0xf]
    %v174 = vld [vmem:[#allocation5 + $0xac] sm:$0xf]
    %v175 = vld [vmem:[#allocation5 + $0xb0] sm:$0xf]
    %v176 = vld [vmem:[#allocation5 + $0xb4] sm:$0xf]
    %v177 = vld [vmem:[#allocation5 + $0xb8] sm:$0xf]
    %v178 = vld [vmem:[#allocation5 + $0xbc] sm:$0xf]
    %v179 = vld [vmem:[#allocation5 + $0xc0] sm:$0xf]
    %v180 = vld [vmem:[#allocation5 + $0xc4] sm:$0xf]
    %v181 = vld [vmem:[#allocation5 + $0xc8] sm:$0xf]
    %v182 = vld [vmem:[#allocation5 + $0xcc] sm:$0xf]
    %v183 = vld [vmem:[#allocation5 + $0xd0] sm:$0xf]
    %v184 = vld [vmem:[#allocation5 + $0xd4] sm:$0xf]
    %v185 = vld [vmem:[#allocation5 + $0xd8] sm:$0xf]
    %v186 = vld [vmem:[#allocation5 + $0xdc] sm:$0xf]
    %v187 = vld [vmem:[#allocation5 + $0xe0] sm:$0xf]
    %v188 = vld [vmem:[#allocation5 + $0xe4] sm:$0xf]
    %v189 = vld [vmem:[#allocation5 + $0xe8] sm:$0xf]
    %v190 = vld [vmem:[#allocation5 + $0xec] sm:$0xf]
    %v191 = vld [vmem:[#allocation5 + $0xf0] sm:$0xf]
    %v192 = vld [vmem:[#allocation5 + $0xf4] sm:$0xf]
    %v193 = vld [vmem:[#allocation5 + $0xf8] sm:$0xf]
    %v194 = vld [vmem:[#allocation5 + $0xfc] sm:$0xf]
    %v195 = vld [vmem:[#allocation5 + $0x100] sm:$0xf]
    %v196 = vld [vmem:[#allocation5 + $0x104] sm:$0xf]
    %v197 = vld [vmem:[#allocation5 + $0x108] sm:$0xf]
    %v198 = vld [vmem:[#allocation5 + $0x10c] sm:$0xf]
    %v199 = vld [vmem:[#allocation5 + $0x110] sm:$0xf]
    %v200 = vld [vmem:[#allocation5 + $0x114] sm:$0xf]
    %v201 = vld [vmem:[#allocation5 + $0x118] sm:$0xf]
    %v202 = vld [vmem:[#allocation5 + $0x11c] sm:$0xf]
    %v203 = vld [vmem:[#allocation5 + $0x120] sm:$0xf]
    %v204 = vld [vmem:[#allocation5 + $0x124] sm:$0xf]
    %v205 = vld [vmem:[#allocation5 + $0x128] sm:$0xf]
    %v206 = vld [vmem:[#allocation5 + $0x12c] sm:$0xf]
    %v207 = vld [vmem:[#allocation5 + $0x130] sm:$0xf]
    %v208 = vld [vmem:[#allocation5 + $0x134] sm:$0xf]
    %v209 = vld [vmem:[#allocation5 + $0x138] sm:$0xf]
    %v210 = vld [vmem:[#allocation5 + $0x13c] sm:$0xf]
    %v211 = vld [vmem:[#allocation5 + $0x140] sm:$0xf]
    %v212 = vld [vmem:[#allocation5 + $0x144] sm:$0xf]
    %v213 = vld [vmem:[#allocation5 + $0x148] sm:$0xf]
    %v214 = vld [vmem:[#allocation5 + $0x14c] sm:$0xf]
    %v215 = vld [vmem:[#allocation5 + $0x150] sm:$0xf]
    %v216 = vld [vmem:[#allocation5 + $0x154] sm:$0xf]
    %v217 = vld [vmem:[#allocation5 + $0x158] sm:$0xf]
    %v218 = vld [vmem:[#allocation5 + $0x15c] sm:$0xf]
    %v219 = vld [vmem:[#allocation5 + $0x160] sm:$0xf]
    %v220 = vld [vmem:[#allocation5 + $0x164] sm:$0xf]
    %v221 = vld [vmem:[#allocation5 + $0x168] sm:$0xf]
    %v222 = vld [vmem:[#allocation5 + $0x16c] sm:$0xf]
    %v223 = vld [vmem:[#allocation5 + $0x170] sm:$0xf]
    %v224 = vld [vmem:[#allocation5 + $0x174] sm:$0xf]
    %v225 = vld [vmem:[#allocation5 + $0x178] sm:$0xf]
    %v226 = vld [vmem:[#allocation5 + $0x17c] sm:$0xf]
    %v227 = vld [vmem:[#allocation5 + $0x180] sm:$0xf]
    %v228 = vld [vmem:[#allocation5 + $0x184] sm:$0xf]
    %v229 = vld [vmem:[#allocation5 + $0x188] sm:$0xf]
    %v230 = vld [vmem:[#allocation5 + $0x18c] sm:$0xf]
    %v231 = vld [vmem:[#allocation5 + $0x190] sm:$0xf]
    %v232 = vld [vmem:[#allocation5 + $0x194] sm:$0xf]
    %v233 = vld [vmem:[#allocation5 + $0x198] sm:$0xf]
    %v234 = vld [vmem:[#allocation5 + $0x19c] sm:$0xf]
    %v235 = vld [vmem:[#allocation5 + $0x1a0] sm:$0xf]
    %v236 = vld [vmem:[#allocation5 + $0x1a4] sm:$0xf]
    %v237 = vld [vmem:[#allocation5 + $0x1a8] sm:$0xf]
    %v238 = vld [vmem:[#allocation5 + $0x1ac] sm:$0xf]
    %v239 = vld [vmem:[#allocation5 + $0x1b0] sm:$0xf]
    %v240 = vld [vmem:[#allocation5 + $0x1b4] sm:$0xf]
    %v241 = vld [vmem:[#allocation5 + $0x1b8] sm:$0xf]
    %v242 = vld [vmem:[#allocation5 + $0x1bc] sm:$0xf]
    %v243 = vld [vmem:[#allocation5 + $0x1c0] sm:$0xf]
    %v244 = vld [vmem:[#allocation5 + $0x1c4] sm:$0xf]
    %v245 = vld [vmem:[#allocation5 + $0x1c8] sm:$0xf]
    %v246 = vld [vmem:[#allocation5 + $0x1cc] sm:$0xf]
    %v247 = vld [vmem:[#allocation5 + $0x1d0] sm:$0xf]
    %v248 = vld [vmem:[#allocation5 + $0x1d4] sm:$0xf]
    %v249 = vld [vmem:[#allocation5 + $0x1d8] sm:$0xf]
    %v250 = vld [vmem:[#allocation5 + $0x1dc] sm:$0xf]
    %v251 = vld [vmem:[#allocation5 + $0x1e0] sm:$0xf]
    %v252 = vld [vmem:[#allocation5 + $0x1e4] sm:$0xf]
    %v253 = vld [vmem:[#allocation5 + $0x1e8] sm:$0xf]
    %v254 = vld [vmem:[#allocation5 + $0x1ec] sm:$0xf]
    %v255 = vld [vmem:[#allocation5 + $0x1f0] sm:$0xf]
    %v256 = vld [vmem:[#allocation5 + $0x1f4] sm:$0xf]
    %v257 = vld [vmem:[#allocation5 + $0x1f8] sm:$0xf]
    %v258 = vld [vmem:[#allocation5 + $0x1fc] sm:$0xf]
    %v259 = vld [vmem:[#allocation7] sm:$0x1]
    %v261 = vlaneseq
    %v262 = vshrl.u32 %v261, 7
    %v263 = vsub.s32 0, %v262
    %v264 = vrot.slane %v259, %v263
    %v394 = vunpack.c.l.b16 %v131
    %v395 = vunpack.c.l.b16 %v132
    %v396 = vunpack.c.l.b16 %v133
    %v397 = vunpack.c.l.b16 %v134
    %v398 = vunpack.c.l.b16 %v135
    %v399 = vunpack.c.l.b16 %v136
    %v400 = vunpack.c.l.b16 %v137
    %v401 = vunpack.c.l.b16 %v138
    %v402 = vunpack.c.l.b16 %v139
    %v403 = vunpack.c.l.b16 %v140
    %v404 = vunpack.c.l.b16 %v141
    %v405 = vunpack.c.l.b16 %v142
    %v406 = vunpack.c.l.b16 %v143
    %v407 = vunpack.c.l.b16 %v144
    %v408 = vunpack.c.l.b16 %v145
    %v409 = vunpack.c.l.b16 %v146
    %v410 = vunpack.c.l.b16 %v147
    %v411 = vunpack.c.l.b16 %v148
    %v412 = vunpack.c.l.b16 %v149
    %v413 = vunpack.c.l.b16 %v150
    %v414 = vunpack.c.l.b16 %v151
    %v415 = vunpack.c.l.b16 %v152
    %v416 = vunpack.c.l.b16 %v153
    %v417 = vunpack.c.l.b16 %v154
    %v418 = vunpack.c.l.b16 %v155
    %v419 = vunpack.c.l.b16 %v156
    %v420 = vunpack.c.l.b16 %v157
    %v421 = vunpack.c.l.b16 %v158
    %v422 = vunpack.c.l.b16 %v159
    %v423 = vunpack.c.l.b16 %v160
    %v424 = vunpack.c.l.b16 %v161
    %v425 = vunpack.c.l.b16 %v162
    %v426 = vunpack.c.l.b16 %v163
    %v427 = vunpack.c.l.b16 %v164
    %v428 = vunpack.c.l.b16 %v165
    %v429 = vunpack.c.l.b16 %v166
    %v430 = vunpack.c.l.b16 %v167
    %v431 = vunpack.c.l.b16 %v168
    %v432 = vunpack.c.l.b16 %v169
    %v433 = vunpack.c.l.b16 %v170
    %v434 = vunpack.c.l.b16 %v171
    %v435 = vunpack.c.l.b16 %v172
    %v436 = vunpack.c.l.b16 %v173
    %v437 = vunpack.c.l.b16 %v174
    %v438 = vunpack.c.l.b16 %v175
    %v439 = vunpack.c.l.b16 %v176
    %v440 = vunpack.c.l.b16 %v177
    %v441 = vunpack.c.l.b16 %v178
    %v442 = vunpack.c.l.b16 %v179
    %v443 = vunpack.c.l.b16 %v180
    %v444 = vunpack.c.l.b16 %v181
    %v445 = vunpack.c.l.b16 %v182
    %v446 = vunpack.c.l.b16 %v183
    %v447 = vunpack.c.l.b16 %v184
    %v448 = vunpack.c.l.b16 %v185
    %v449 = vunpack.c.l.b16 %v186
    %v450 = vunpack.c.l.b16 %v187
    %v451 = vunpack.c.l.b16 %v188
    %v452 = vunpack.c.l.b16 %v189
    %v453 = vunpack.c.l.b16 %v190
    %v454 = vunpack.c.l.b16 %v191
    %v455 = vunpack.c.l.b16 %v192
    %v456 = vunpack.c.l.b16 %v193
    %v457 = vunpack.c.l.b16 %v194
    %v458 = vunpack.c.l.b16 %v195
    %v459 = vunpack.c.l.b16 %v196
    %v460 = vunpack.c.l.b16 %v197
    %v461 = vunpack.c.l.b16 %v198
    %v462 = vunpack.c.l.b16 %v199
    %v463 = vunpack.c.l.b16 %v200
    %v464 = vunpack.c.l.b16 %v201
    %v465 = vunpack.c.l.b16 %v202
    %v466 = vunpack.c.l.b16 %v203
    %v467 = vunpack.c.l.b16 %v204
    %v468 = vunpack.c.l.b16 %v205
    %v469 = vunpack.c.l.b16 %v206
    %v470 = vunpack.c.l.b16 %v207
    %v471 = vunpack.c.l.b16 %v208
    %v472 = vunpack.c.l.b16 %v209
    %v473 = vunpack.c.l.b16 %v210
    %v474 = vunpack.c.l.b16 %v211
    %v475 = vunpack.c.l.b16 %v212
    %v476 = vunpack.c.l.b16 %v213
    %v477 = vunpack.c.l.b16 %v214
    %v478 = vunpack.c.l.b16 %v215
    %v479 = vunpack.c.l.b16 %v216
    %v480 = vunpack.c.l.b16 %v217
    %v481 = vunpack.c.l.b16 %v218
    %v482 = vunpack.c.l.b16 %v219
    %v483 = vunpack.c.l.b16 %v220
    %v484 = vunpack.c.l.b16 %v221
    %v485 = vunpack.c.l.b16 %v222
    %v486 = vunpack.c.l.b16 %v223
    %v487 = vunpack.c.l.b16 %v224
    %v488 = vunpack.c.l.b16 %v225
    %v489 = vunpack.c.l.b16 %v226
    %v490 = vunpack.c.l.b16 %v227
    %v491 = vunpack.c.l.b16 %v228
    %v492 = vunpack.c.l.b16 %v229
    %v493 = vunpack.c.l.b16 %v230
    %v494 = vunpack.c.l.b16 %v231
    %v495 = vunpack.c.l.b16 %v232
    %v496 = vunpack.c.l.b16 %v233
    %v497 = vunpack.c.l.b16 %v234
    %v498 = vunpack.c.l.b16 %v235
    %v499 = vunpack.c.l.b16 %v236
    %v500 = vunpack.c.l.b16 %v237
    %v501 = vunpack.c.l.b16 %v238
    %v502 = vunpack.c.l.b16 %v239
    %v503 = vunpack.c.l.b16 %v240
    %v504 = vunpack.c.l.b16 %v241
    %v505 = vunpack.c.l.b16 %v242
    %v506 = vunpack.c.l.b16 %v243
    %v507 = vunpack.c.l.b16 %v244
    %v508 = vunpack.c.l.b16 %v245
    %v509 = vunpack.c.l.b16 %v246
    %v510 = vunpack.c.l.b16 %v247
    %v511 = vunpack.c.l.b16 %v248
    %v512 = vunpack.c.l.b16 %v249
    %v513 = vunpack.c.l.b16 %v250
    %v514 = vunpack.c.l.b16 %v251
    %v515 = vunpack.c.l.b16 %v252
    %v516 = vunpack.c.l.b16 %v253
    %v517 = vunpack.c.l.b16 %v254
    %v518 = vunpack.c.l.b16 %v255
    %v519 = vunpack.c.l.b16 %v256
    %v520 = vunpack.c.l.b16 %v257
    %v521 = vunpack.c.l.b16 %v258
    %v522 = vpack.c.b16 %v395, %v394
    %v523 = vpack.c.b16 %v397, %v396
    %v524 = vpack.c.b16 %v399, %v398
    %v525 = vpack.c.b16 %v401, %v400
    %v526 = vpack.c.b16 %v403, %v402
    %v527 = vpack.c.b16 %v405, %v404
    %v528 = vpack.c.b16 %v407, %v406
    %v529 = vpack.c.b16 %v409, %v408
    %v530 = vpack.c.b16 %v411, %v410
    %v531 = vpack.c.b16 %v413, %v412
    %v532 = vpack.c.b16 %v415, %v414
    %v533 = vpack.c.b16 %v417, %v416
    %v534 = vpack.c.b16 %v419, %v418
    %v535 = vpack.c.b16 %v421, %v420
    %v536 = vpack.c.b16 %v423, %v422
    %v537 = vpack.c.b16 %v425, %v424
    %v538 = vpack.c.b16 %v427, %v426
    %v539 = vpack.c.b16 %v429, %v428
    %v540 = vpack.c.b16 %v431, %v430
    %v541 = vpack.c.b16 %v433, %v432
    %v542 = vpack.c.b16 %v435, %v434
    %v543 = vpack.c.b16 %v437, %v436
    %v544 = vpack.c.b16 %v439, %v438
    %v545 = vpack.c.b16 %v441, %v440
    %v546 = vpack.c.b16 %v443, %v442
    %v547 = vpack.c.b16 %v445, %v444
    %v548 = vpack.c.b16 %v447, %v446
    %v549 = vpack.c.b16 %v449, %v448
    %v550 = vpack.c.b16 %v451, %v450
    %v551 = vpack.c.b16 %v453, %v452
    %v552 = vpack.c.b16 %v455, %v454
    %v553 = vpack.c.b16 %v457, %v456
    %v554 = vpack.c.b16 %v459, %v458
    %v555 = vpack.c.b16 %v461, %v460
    %v556 = vpack.c.b16 %v463, %v462
    %v557 = vpack.c.b16 %v465, %v464
    %v558 = vpack.c.b16 %v467, %v466
    %v559 = vpack.c.b16 %v469, %v468
    %v560 = vpack.c.b16 %v471, %v470
    %v561 = vpack.c.b16 %v473, %v472
    %v562 = vpack.c.b16 %v475, %v474
    %v563 = vpack.c.b16 %v477, %v476
    %v564 = vpack.c.b16 %v479, %v478
    %v565 = vpack.c.b16 %v481, %v480
    %v566 = vpack.c.b16 %v483, %v482
    %v567 = vpack.c.b16 %v485, %v484
    %v568 = vpack.c.b16 %v487, %v486
    %v569 = vpack.c.b16 %v489, %v488
    %v570 = vpack.c.b16 %v491, %v490
    %v571 = vpack.c.b16 %v493, %v492
    %v572 = vpack.c.b16 %v495, %v494
    %v573 = vpack.c.b16 %v497, %v496
    %v574 = vpack.c.b16 %v499, %v498
    %v575 = vpack.c.b16 %v501, %v500
    %v576 = vpack.c.b16 %v503, %v502
    %v577 = vpack.c.b16 %v505, %v504
    %v578 = vpack.c.b16 %v507, %v506
    %v579 = vpack.c.b16 %v509, %v508
    %v580 = vpack.c.b16 %v511, %v510
    %v581 = vpack.c.b16 %v513, %v512
    %v582 = vpack.c.b16 %v515, %v514
    %v583 = vpack.c.b16 %v517, %v516
    %v584 = vpack.c.b16 %v519, %v518
    %v585 = vpack.c.b16 %v521, %v520
    %650 = vmatprep.subr.bf16.mxu0 0
    %651 = vmatpush1.bf16.msra.mxu0 %v522
    %652 = vmatprep.subr.bf16.mxu0 0
    %653 = vmatpush1.bf16.msra.mxu0 %v523
    %654 = vmatprep.subr.bf16.mxu0 0
    %655 = vmatpush1.bf16.msra.mxu0 %v524
    %656 = vmatprep.subr.bf16.mxu0 0
    %657 = vmatpush1.bf16.msra.mxu0 %v525
    %658 = vmatprep.subr.bf16.mxu0 0
    %659 = vmatpush1.bf16.msra.mxu0 %v526
    %660 = vmatprep.subr.bf16.mxu0 0
    %661 = vmatpush1.bf16.msra.mxu0 %v527
    %662 = vmatprep.subr.bf16.mxu0 0
    %663 = vmatpush1.bf16.msra.mxu0 %v528
    %664 = vmatprep.subr.bf16.mxu0 0
    %665 = vmatpush1.bf16.msra.mxu0 %v529
    %666 = vmatprep.subr.bf16.mxu0 0
    %667 = vmatpush1.bf16.msra.mxu0 %v530
    %668 = vmatprep.subr.bf16.mxu0 0
    %669 = vmatpush1.bf16.msra.mxu0 %v531
    %670 = vmatprep.subr.bf16.mxu0 0
    %671 = vmatpush1.bf16.msra.mxu0 %v532
    %672 = vmatprep.subr.bf16.mxu0 0
    %673 = vmatpush1.bf16.msra.mxu0 %v533
    %674 = vmatprep.subr.bf16.mxu0 0
    %675 = vmatpush1.bf16.msra.mxu0 %v534
    %676 = vmatprep.subr.bf16.mxu0 0
    %677 = vmatpush1.bf16.msra.mxu0 %v535
    %678 = vmatprep.subr.bf16.mxu0 0
    %679 = vmatpush1.bf16.msra.mxu0 %v536
    %680 = vmatprep.subr.bf16.mxu0 0
    %681 = vmatpush1.bf16.msra.mxu0 %v537
    %682 = vmatprep.mubr.bf16.mxu0 %v124
    %683 = vmatmul.mubr.bf16.gmra.mrb[0].mxu0 %v123
    %v684 = vpop.f32.mrb[0].mxu0
    %v685 = vadd.f32 %v264, %v684
    %v686 = vpop.f32.mrb[0].mxu0
    %v687 = vpop.f32.mrb[0].mxu0
    %v688 = vpop.f32.mrb[0].mxu0
    %689 = vdwg.mxu0
    %690 = vmatprep.subr.bf16.mxu0 0
    %691 = vmatpush1.bf16.msra.mxu0 %v538
    %692 = vmatprep.subr.bf16.mxu0 0
    %693 = vmatpush1.bf16.msra.mxu0 %v539
    %694 = vmatprep.subr.bf16.mxu0 0
    %695 = vmatpush1.bf16.msra.mxu0 %v540
    %696 = vmatprep.subr.bf16.mxu0 0
    %697 = vmatpush1.bf16.msra.mxu0 %v541
    %698 = vmatprep.subr.bf16.mxu0 0
    %699 = vmatpush1.bf16.msra.mxu0 %v542
    %700 = vmatprep.subr.bf16.mxu0 0
    %701 = vmatpush1.bf16.msra.mxu0 %v543
    %702 = vmatprep.subr.bf16.mxu0 0
    %703 = vmatpush1.bf16.msra.mxu0 %v544
    %704 = vmatprep.subr.bf16.mxu0 0
    %705 = vmatpush1.bf16.msra.mxu0 %v545
    %706 = vmatprep.subr.bf16.mxu0 0
    %707 = vmatpush1.bf16.msra.mxu0 %v546
    %708 = vmatprep.subr.bf16.mxu0 0
    %709 = vmatpush1.bf16.msra.mxu0 %v547
    %710 = vmatprep.subr.bf16.mxu0 0
    %711 = vmatpush1.bf16.msra.mxu0 %v548
    %712 = vmatprep.subr.bf16.mxu0 0
    %713 = vmatpush1.bf16.msra.mxu0 %v549
    %714 = vmatprep.subr.bf16.mxu0 0
    %715 = vmatpush1.bf16.msra.mxu0 %v550
    %716 = vmatprep.subr.bf16.mxu0 0
    %717 = vmatpush1.bf16.msra.mxu0 %v551
    %718 = vmatprep.subr.bf16.mxu0 0
    %719 = vmatpush1.bf16.msra.mxu0 %v552
    %720 = vmatprep.subr.bf16.mxu0 0
    %721 = vmatpush1.bf16.msra.mxu0 %v553
    %722 = vmatprep.mubr.bf16.mxu0 %v126
    %723 = vmatmul.mubr.bf16.gmra.mrb[0].mxu0 %v125
    %v724 = vpop.f32.mrb[0].mxu0
    %v725 = vadd.f32 %v685, %v724
    %v726 = vpop.f32.mrb[0].mxu0
    %v727 = vpop.f32.mrb[0].mxu0
    %v728 = vpop.f32.mrb[0].mxu0
    %729 = vdwg.mxu0
    %730 = vmatprep.subr.bf16.mxu0 0
    %731 = vmatpush1.bf16.msra.mxu0 %v554
    %732 = vmatprep.subr.bf16.mxu0 0
    %733 = vmatpush1.bf16.msra.mxu0 %v555
    %734 = vmatprep.subr.bf16.mxu0 0
    %735 = vmatpush1.bf16.msra.mxu0 %v556
    %736 = vmatprep.subr.bf16.mxu0 0
    %737 = vmatpush1.bf16.msra.mxu0 %v557
    %738 = vmatprep.subr.bf16.mxu0 0
    %739 = vmatpush1.bf16.msra.mxu0 %v558
    %740 = vmatprep.subr.bf16.mxu0 0
    %741 = vmatpush1.bf16.msra.mxu0 %v559
    %742 = vmatprep.subr.bf16.mxu0 0
    %743 = vmatpush1.bf16.msra.mxu0 %v560
    %744 = vmatprep.subr.bf16.mxu0 0
    %745 = vmatpush1.bf16.msra.mxu0 %v561
    %746 = vmatprep.subr.bf16.mxu0 0
    %747 = vmatpush1.bf16.msra.mxu0 %v562
    %748 = vmatprep.subr.bf16.mxu0 0
    %749 = vmatpush1.bf16.msra.mxu0 %v563
    %750 = vmatprep.subr.bf16.mxu0 0
    %751 = vmatpush1.bf16.msra.mxu0 %v564
    %752 = vmatprep.subr.bf16.mxu0 0
    %753 = vmatpush1.bf16.msra.mxu0 %v565
    %754 = vmatprep.subr.bf16.mxu0 0
    %755 = vmatpush1.bf16.msra.mxu0 %v566
    %756 = vmatprep.subr.bf16.mxu0 0
    %757 = vmatpush1.bf16.msra.mxu0 %v567
    %758 = vmatprep.subr.bf16.mxu0 0
    %759 = vmatpush1.bf16.msra.mxu0 %v568
    %760 = vmatprep.subr.bf16.mxu0 0
    %761 = vmatpush1.bf16.msra.mxu0 %v569
    %762 = vmatprep.mubr.bf16.mxu0 %v128
    %763 = vmatmul.mubr.bf16.gmra.mrb[0].mxu0 %v127
    %v764 = vpop.f32.mrb[0].mxu0
    %v765 = vadd.f32 %v725, %v764
    %v766 = vpop.f32.mrb[0].mxu0
    %v767 = vpop.f32.mrb[0].mxu0
    %v768 = vpop.f32.mrb[0].mxu0
    %769 = vdwg.mxu0
    %770 = vmatprep.subr.bf16.mxu0 0
    %771 = vmatpush1.bf16.msra.mxu0 %v570
    %772 = vmatprep.subr.bf16.mxu0 0
    %773 = vmatpush1.bf16.msra.mxu0 %v571
    %774 = vmatprep.subr.bf16.mxu0 0
    %775 = vmatpush1.bf16.msra.mxu0 %v572
    %776 = vmatprep.subr.bf16.mxu0 0
    %777 = vmatpush1.bf16.msra.mxu0 %v573
    %778 = vmatprep.subr.bf16.mxu0 0
    %779 = vmatpush1.bf16.msra.mxu0 %v574
    %780 = vmatprep.subr.bf16.mxu0 0
    %781 = vmatpush1.bf16.msra.mxu0 %v575
    %782 = vmatprep.subr.bf16.mxu0 0
    %783 = vmatpush1.bf16.msra.mxu0 %v576
    %784 = vmatprep.subr.bf16.mxu0 0
    %785 = vmatpush1.bf16.msra.mxu0 %v577
    %786 = vmatprep.subr.bf16.mxu0 0
    %787 = vmatpush1.bf16.msra.mxu0 %v578
    %788 = vmatprep.subr.bf16.mxu0 0
    %789 = vmatpush1.bf16.msra.mxu0 %v579
    %790 = vmatprep.subr.bf16.mxu0 0
    %791 = vmatpush1.bf16.msra.mxu0 %v580
    %792 = vmatprep.subr.bf16.mxu0 0
    %793 = vmatpush1.bf16.msra.mxu0 %v581
    %794 = vmatprep.subr.bf16.mxu0 0
    %795 = vmatpush1.bf16.msra.mxu0 %v582
    %796 = vmatprep.subr.bf16.mxu0 0
    %797 = vmatpush1.bf16.msra.mxu0 %v583
    %798 = vmatprep.subr.bf16.mxu0 0
    %799 = vmatpush1.bf16.msra.mxu0 %v584
    %800 = vmatprep.subr.bf16.mxu0 0
    %801 = vmatpush1.bf16.msra.mxu0 %v585
    %802 = vmatprep.mubr.bf16.mxu0 %v130
    %803 = vmatmul.mubr.bf16.gmra.mrb[0].mxu0 %v129
    %v804 = vpop.f32.mrb[0].mxu0
    %v805 = vadd.f32 %v765, %v804
    %v806 = vpop.f32.mrb[0].mxu0
    %v807 = vpop.f32.mrb[0].mxu0
    %v808 = vpop.f32.mrb[0].mxu0
    %809 = vdwg.mxu0
    %v810 = vmax.f32 %v805, 0.0
    %v811 = vpack.c.bf16 %v810, %v810
    %v812 = vld [vmem:[#allocation8] sm:$0xf]
    %v813 = vld [vmem:[#allocation8 + $0x4] sm:$0xf]
    %v814 = vld [vmem:[#allocation8 + $0x8] sm:$0xf]
    %v815 = vld [vmem:[#allocation8 + $0xc] sm:$0xf]
    %v816 = vld [vmem:[#allocation8 + $0x10] sm:$0xf]
    %v817 = vld [vmem:[#allocation8 + $0x14] sm:$0xf]
    %v818 = vld [vmem:[#allocation8 + $0x18] sm:$0xf]
    %v819 = vld [vmem:[#allocation8 + $0x1c] sm:$0xf]
    %v820 = vld [vmem:[#allocation8 + $0x20] sm:$0xf]
    %v821 = vld [vmem:[#allocation8 + $0x24] sm:$0xf]
    %v822 = vld [vmem:[#allocation8 + $0x28] sm:$0xf]
    %v823 = vld [vmem:[#allocation8 + $0x2c] sm:$0xf]
    %v824 = vld [vmem:[#allocation8 + $0x30] sm:$0xf]
    %v825 = vld [vmem:[#allocation8 + $0x34] sm:$0xf]
    %v826 = vld [vmem:[#allocation8 + $0x38] sm:$0xf]
    %v827 = vld [vmem:[#allocation8 + $0x3c] sm:$0xf]
    %v828 = vld [vmem:[#allocation10] sm:$0x1]
    %v830 = vlaneseq
    %v831 = vshrl.u32 %v830, 7
    %v832 = vsub.s32 0, %v831
    %v833 = vrot.slane %v828, %v832
    %v851 = vunpack.c.l.b16 %v812
    %v852 = vunpack.c.l.b16 %v813
    %v853 = vunpack.c.l.b16 %v814
    %v854 = vunpack.c.l.b16 %v815
    %v855 = vunpack.c.l.b16 %v816
    %v856 = vunpack.c.l.b16 %v817
    %v857 = vunpack.c.l.b16 %v818
    %v858 = vunpack.c.l.b16 %v819
    %v859 = vunpack.c.l.b16 %v820
    %v860 = vunpack.c.l.b16 %v821
    %v861 = vunpack.c.l.b16 %v822
    %v862 = vunpack.c.l.b16 %v823
    %v863 = vunpack.c.l.b16 %v824
    %v864 = vunpack.c.l.b16 %v825
    %v865 = vunpack.c.l.b16 %v826
    %v866 = vunpack.c.l.b16 %v827
    %v867 = vpack.c.b16 %v852, %v851
    %v868 = vpack.c.b16 %v854, %v853
    %v869 = vpack.c.b16 %v856, %v855
    %v870 = vpack.c.b16 %v858, %v857
    %v871 = vpack.c.b16 %v860, %v859
    %v872 = vpack.c.b16 %v862, %v861
    %v873 = vpack.c.b16 %v864, %v863
    %v874 = vpack.c.b16 %v866, %v865
    %883 = vmatprep.subr.bf16.mxu0 0
    %884 = vmatpush1.bf16.msra.mxu0 %v867
    %885 = vmatprep.subr.bf16.mxu0 0
    %886 = vmatpush1.bf16.msra.mxu0 %v868
    %887 = vmatprep.subr.bf16.mxu0 0
    %888 = vmatpush1.bf16.msra.mxu0 %v869
    %889 = vmatprep.subr.bf16.mxu0 0
    %890 = vmatpush1.bf16.msra.mxu0 %v870
    %891 = vmatprep.subr.bf16.mxu0 0
    %892 = vmatpush1.bf16.msra.mxu0 %v871
    %893 = vmatprep.subr.bf16.mxu0 0
    %894 = vmatpush1.bf16.msra.mxu0 %v872
    %895 = vmatprep.subr.bf16.mxu0 0
    %896 = vmatpush1.bf16.msra.mxu0 %v873
    %897 = vmatprep.subr.bf16.mxu0 0
    %898 = vmatpush1.bf16.msra.mxu0 %v874
    %899 = vmatprep.subr.bf16.mxu0 0
    %900 = vmatpush1.bf16.msra.mxu0 0
    %901 = vmatprep.subr.bf16.mxu0 0
    %902 = vmatpush1.bf16.msra.mxu0 0
    %903 = vmatprep.subr.bf16.mxu0 0
    %904 = vmatpush1.bf16.msra.mxu0 0
    %905 = vmatprep.subr.bf16.mxu0 0
    %906 = vmatpush1.bf16.msra.mxu0 0
    %907 = vmatprep.subr.bf16.mxu0 0
    %908 = vmatpush1.bf16.msra.mxu0 0
    %909 = vmatprep.subr.bf16.mxu0 0
    %910 = vmatpush1.bf16.msra.mxu0 0
    %911 = vmatprep.subr.bf16.mxu0 0
    %912 = vmatpush1.bf16.msra.mxu0 0
    %913 = vmatprep.subr.bf16.mxu0 0
    %914 = vmatpush1.bf16.msra.mxu0 0
    %915 = vmatprep.mubr.bf16.mxu0 0
    %916 = vmatmul.mubr.bf16.gmra.mrb[0].mxu0 %v811
    %v917 = vpop.f32.mrb[0].mxu0
    %v918 = vadd.f32 %v833, %v917
    %v919 = vpop.f32.mrb[0].mxu0
    %v920 = vpop.f32.mrb[0].mxu0
    %v921 = vpop.f32.mrb[0].mxu0
    %922 = vdwg.mxu0
    %v923 = vmax.f32 %v918, 0.0
    %v924 = vpack.c.bf16 %v923, %v923
    %v925 = vld [vmem:[#allocation11] sm:$0xf]
    %v926 = vld [vmem:[#allocation11 + $0x4] sm:$0xf]
    %v927 = vld [vmem:[#allocation11 + $0x8] sm:$0xf]
    %v928 = vld [vmem:[#allocation11 + $0xc] sm:$0xf]
    %v929 = vld [vmem:[#allocation11 + $0x10] sm:$0xf]
    %v930 = vld [vmem:[#allocation11 + $0x14] sm:$0xf]
    %v931 = vld [vmem:[#allocation11 + $0x18] sm:$0xf]
    %v932 = vld [vmem:[#allocation11 + $0x1c] sm:$0xf]
    %v933 = vld [vmem:[#allocation11 + $0x20] sm:$0xf]
    %v934 = vld [vmem:[#allocation11 + $0x24] sm:$0xf]
    %v935 = vld [vmem:[#allocation11 + $0x28] sm:$0xf]
    %v936 = vld [vmem:[#allocation11 + $0x2c] sm:$0xf]
    %v937 = vld [vmem:[#allocation11 + $0x30] sm:$0xf]
    %v938 = vld [vmem:[#allocation11 + $0x34] sm:$0xf]
    %v939 = vld [vmem:[#allocation11 + $0x38] sm:$0xf]
    %v940 = vld [vmem:[#allocation11 + $0x3c] sm:$0xf]
    %v941 = vld [vmem:[#allocation13] sm:$0x1]
    %v943 = vlaneseq
    %v944 = vshrl.u32 %v943, 7
    %v945 = vsub.s32 0, %v944
    %v946 = vrot.slane %v941, %v945
    %v964 = vunpack.c.l.b16 %v925
    %v965 = vunpack.c.l.b16 %v926
    %v966 = vunpack.c.l.b16 %v927
    %v967 = vunpack.c.l.b16 %v928
    %v968 = vunpack.c.l.b16 %v929
    %v969 = vunpack.c.l.b16 %v930
    %v970 = vunpack.c.l.b16 %v931
    %v971 = vunpack.c.l.b16 %v932
    %v972 = vunpack.c.l.b16 %v933
    %v973 = vunpack.c.l.b16 %v934
    %v974 = vunpack.c.l.b16 %v935
    %v975 = vunpack.c.l.b16 %v936
    %v976 = vunpack.c.l.b16 %v937
    %v977 = vunpack.c.l.b16 %v938
    %v978 = vunpack.c.l.b16 %v939
    %v979 = vunpack.c.l.b16 %v940
    %v980 = vpack.c.b16 %v965, %v964
    %v981 = vpack.c.b16 %v967, %v966
    %v982 = vpack.c.b16 %v969, %v968
    %v983 = vpack.c.b16 %v971, %v970
    %v984 = vpack.c.b16 %v973, %v972
    %v985 = vpack.c.b16 %v975, %v974
    %v986 = vpack.c.b16 %v977, %v976
    %v987 = vpack.c.b16 %v979, %v978
    %996 = vmatprep.subr.bf16.mxu0 0
    %997 = vmatpush1.bf16.msra.mxu0 %v980
    %998 = vmatprep.subr.bf16.mxu0 0
    %999 = vmatpush1.bf16.msra.mxu0 %v981
    %1000 = vmatprep.subr.bf16.mxu0 0
    %1001 = vmatpush1.bf16.msra.mxu0 %v982
    %1002 = vmatprep.subr.bf16.mxu0 0
    %1003 = vmatpush1.bf16.msra.mxu0 %v983
    %1004 = vmatprep.subr.bf16.mxu0 0
    %1005 = vmatpush1.bf16.msra.mxu0 %v984
    %1006 = vmatprep.subr.bf16.mxu0 0
    %1007 = vmatpush1.bf16.msra.mxu0 %v985
    %1008 = vmatprep.subr.bf16.mxu0 0
    %1009 = vmatpush1.bf16.msra.mxu0 %v986
    %1010 = vmatprep.subr.bf16.mxu0 0
    %1011 = vmatpush1.bf16.msra.mxu0 %v987
    %1012 = vmatprep.subr.bf16.mxu0 0
    %1013 = vmatpush1.bf16.msra.mxu0 0
    %1014 = vmatprep.subr.bf16.mxu0 0
    %1015 = vmatpush1.bf16.msra.mxu0 0
    %1016 = vmatprep.subr.bf16.mxu0 0
    %1017 = vmatpush1.bf16.msra.mxu0 0
    %1018 = vmatprep.subr.bf16.mxu0 0
    %1019 = vmatpush1.bf16.msra.mxu0 0
    %1020 = vmatprep.subr.bf16.mxu0 0
    %1021 = vmatpush1.bf16.msra.mxu0 0
    %1022 = vmatprep.subr.bf16.mxu0 0
    %1023 = vmatpush1.bf16.msra.mxu0 0
    %1024 = vmatprep.subr.bf16.mxu0 0
    %1025 = vmatpush1.bf16.msra.mxu0 0
    %1026 = vmatprep.subr.bf16.mxu0 0
    %1027 = vmatpush1.bf16.msra.mxu0 0
    %1028 = vmatprep.mubr.bf16.mxu0 0
    %1029 = vmatmul.mubr.bf16.gmra.mrb[0].mxu0 %v924
    %v1030 = vpop.f32.mrb[0].mxu0
    %v1031 = vadd.f32 %v946, %v1030
    %v1032 = vpop.f32.mrb[0].mxu0
    %v1033 = vpop.f32.mrb[0].mxu0
    %v1034 = vpop.f32.mrb[0].mxu0
    %1035 = vdwg.mxu0
    %1036 = vst [vmem:[#allocation14] sm:$0xff] %v1031
    // Predicated region
    $region58: #{tpu_custom_call.1} parent=1 // pred_check
      _
    $region59: #{tpu_custom_call.1} parent=1 // pred_check_branch
      %1038 = sbr.rel (0) target = $region61
    $region60: #{tpu_custom_call.1} parent=1 // pred_region
      %s1040 = ssub.s32 128, 128
      %1041 = vsyncadd [#allocation4], %s1040
      %s1043 = sshll.u32 [#allocation14], 4
      %s1044 = int_to_ptr.vmem [resolvable:$true] %s1043
      %1046 = dma.vmem_to_hbm [thread:$0]  %s1044, 128, %s7, [#allocation4]
    $region61: #{tpu_custom_call.1} parent=1 // pred_fallthru
      _
    // Predicated region
    $region62: #{tpu_custom_call.1} parent=1 // pred_check
      _
    $region63: #{tpu_custom_call.1} parent=1 // pred_check_branch
      %1048 = sbr.rel (0) target = $region65
    $region64: #{tpu_custom_call.1} parent=1 // pred_region
      %1049 = dma.done [#allocation4], 128
    $region65: #{tpu_custom_call.1} parent=1 // pred_fallthru
      _
    %1050 = vsyncpa [#allocation3], 1
    %1051 = vsyncpa [#allocation6], 1
    %1052 = vsyncpa [#allocation9], 1
    %1053 = vsyncpa [#allocation12], 1
    %1054 = vsyncpa [#allocation4], 1

// kernel: tpu_custom_call.1
$region0: #{tpu_custom_call.1}
  #allocation0 [shape = 'u32[]', space=smem, size = 0x4, offset = 0x4, fixed_abs, tag = 'smem constant byte address 0x4 - core index']
  #allocation1 [shape = 'u32[144,128]{1,0:T(1,128)}', space=vmem, size = 0x12000, scoped, tag = 'internal scratch']
  %s0 = inlined_call_operand.hbm [shape: f32[8,1024], index: 0, kind: input, shape index: {}]
  %s1 = inlined_call_operand.hbm [shape: bf16[1024,128], index: 1, kind: input, shape index: {}]
  %s2 = inlined_call_operand.hbm [shape: f32[1,128], index: 2, kind: input, shape index: {}]
  %s3 = inlined_call_operand.hbm [shape: bf16[128,128], index: 3, kind: input, shape index: {}]
  %s4 = inlined_call_operand.hbm [shape: f32[1,128], index: 4, kind: input, shape index: {}]
  %s5 = inlined_call_operand.hbm [shape: bf16[128,128], index: 5, kind: input, shape index: {}]
  %s6 = inlined_call_operand.hbm [shape: f32[1,128], index: 6, kind: input, shape index: {}]
  %s7 = inlined_call_operand.hbm [shape: f32[8,128], index: 7, kind: output, shape index: {}]
  %s8 = sld [smem:[#allocation0]]
  $region66: #{tpu_custom_call.1} parent=0
    _
  %s10 = ssub.s32 1, %s8
  %s11 = scalar_select 0, %s10, %s8
  $region1: #{tpu_custom_call.1} parent=0
    #allocation2 [shape = 'u8[32768]{0}', space=vmem, size = 0x8000, scoped, tag = 'input window, operand 0, single buffered']
    #allocation3 [shape = 's32[1]{0}', space=sflag, size = 0x4, scoped, tag = 'scoped memory for tpu_custom_call.1']
    #allocation4 [shape = 's32[1]{0}', space=sflag, size = 0x4, scoped, tag = 'scoped memory for tpu_custom_call.1']
    #allocation5 [shape = 'u8[262144]{0}', space=vmem, size = 0x40000, scoped, tag = 'input window, operand 1, single buffered']
    #allocation6 [shape = 's32[1]{0}', space=sflag, size = 0x4, scoped, tag = 'scoped memory for tpu_custom_call.1']
    #allocation7 [shape = 'u8[512]{0}', space=vmem, size = 0x400, scoped, tag = 'input window, operand 2, single buffered']
    #allocation8 [shape = 'u8[32768]{0}', space=vmem, size = 0x8000, scoped, tag = 'input window, operand 3, single buffered']
    #allocation9 [shape = 's32[1]{0}', space=sflag, size = 0x4, scoped, tag = 'scoped memory for tpu_custom_call.1']
    #allocation10 [shape = 'u8[512]{0}', space=vmem, size = 0x400, scoped, tag = 'input window, operand 4, single buffered']
    #allocation11 [shape = 'u8[32768]{0}', space=vmem, size = 0x8000, scoped, tag = 'input window, operand 5, single buffered']
    #allocation12 [shape = 's32[1]{0}', space=sflag, size = 0x4, scoped, tag = 'scoped memory for tpu_custom_call.1']
    #allocation13 [shape = 'u8[512]{0}', space=vmem, size = 0x400, scoped, tag = 'input window, operand 6, single buffered']
    #allocation14 [shape = 'u8[4096]{0}', space=vmem, size = 0x1000, scoped, tag = 'output window, operand 0, single buffered']
    %12 = vsyncpa [#allocation3], 0
    %13 = vsyncpa [#allocation6], 0
    %14 = vsyncpa [#allocation9], 0
    %15 = vsyncpa [#allocation12], 0
    %16 = vsyncpa [#allocation4], 0
    // Predicated region
    $region2: #{tpu_custom_call.1} parent=1 // pred_check
      _
    $region3: #{tpu_custom_call.1} parent=1 // pred_check_branch
      %18 = sbr.rel (0) target = $region5
    $region4: #{tpu_custom_call.1} parent=1 // pred_region
      %s20 = ssub.s32 1024, 1024
      %21 = vsyncadd [#allocation3], %s20
      %s23 = sshll.u32 [#allocation2], 4
      %s24 = int_to_ptr.vmem [resolvable:$true] %s23
      %26 = dma.hbm_to_vmem [thread:$0]  %s0, 1024, %s24, [#allocation3]
    $region5: #{tpu_custom_call.1} parent=1 // pred_fallthru
      _
    // Predicated region
    $region6: #{tpu_custom_call.1} parent=1 // pred_check
      _
    $region7: #{tpu_custom_call.1} parent=1 // pred_check_branch
      %28 = sbr.rel (0) target = $region9
    $region8: #{tpu_custom_call.1} parent=1 // pred_region
      %s30 = ssub.s32 8192, 8192
      %31 = vsyncadd [#allocation6], %s30
      %s32 = sshll.u32 [#allocation5], 4
      %s33 = int_to_ptr.vmem [resolvable:$true] %s32
      %38 = dma.hbm_to_vmem [thread:$0]  %s1, 8192, %s33, [#allocation6], 64, 64, 4
    $region9: #{tpu_custom_call.1} parent=1 // pred_fallthru
      _
    // Predicated region
    $region10: #{tpu_custom_call.1} parent=1 // pred_check
      _
    $region11: #{tpu_custom_call.1} parent=1 // pred_check_branch
      %40 = sbr.rel (0) target = $region13
    $region12: #{tpu_custom_call.1} parent=1 // pred_region
      %s42 = ssub.s32 16, 16
      %43 = vsyncadd [#allocation6], %s42
      %s45 = sshll.u32 [#allocation7], 4
      %s46 = int_to_ptr.vmem [resolvable:$true] %s45
      %48 = dma.hbm_to_vmem [thread:$0]  %s2, 16, %s46, [#allocation6]
    $region13: #{tpu_custom_call.1} parent=1 // pred_fallthru
      _
    // Predicated region
    $region14: #{tpu_custom_call.1} parent=1 // pred_check
      _
    $region15: #{tpu_custom_call.1} parent=1 // pred_check_branch
      %50 = sbr.rel (0) target = $region17
    $region16: #{tpu_custom_call.1} parent=1 // pred_region
      %s52 = ssub.s32 1024, 1024
      %53 = vsyncadd [#allocation9], %s52
      %s54 = sshll.u32 [#allocation8], 4
      %s55 = int_to_ptr.vmem [resolvable:$true] %s54
      %60 = dma.hbm_to_vmem [thread:$0]  %s3, 1024, %s55, [#allocation9], 64, 64, 4
    $region17: #{tpu_custom_call.1} parent=1 // pred_fallthru
      _
    // Predicated region
    $region18: #{tpu_custom_call.1} parent=1 // pred_check
      _
    $region19: #{tpu_custom_call.1} parent=1 // pred_check_branch
      %62 = sbr.rel (0) target = $region21
    $region20: #{tpu_custom_call.1} parent=1 // pred_region
      %s64 = ssub.s32 16, 16
      %65 = vsyncadd [#allocation9], %s64
      %s67 = sshll.u32 [#allocation10], 4
      %s68 = int_to_ptr.vmem [resolvable:$true] %s67
      %70 = dma.hbm_to_vmem [thread:$0]  %s4, 16, %s68, [#allocation9]
    $region21: #{tpu_custom_call.1} parent=1 // pred_fallthru
      _
    // Predicated region
    $region22: #{tpu_custom_call.1} parent=1 // pred_check
      _
    $region23: #{tpu_custom_call.1} parent=1 // pred_check_branch
      %72 = sbr.rel (0) target = $region25
    $region24: #{tpu_custom_call.1} parent=1 // pred_region
      %s74 = ssub.s32 1024, 1024
      %75 = vsyncadd [#allocation12], %s74
      %s76 = sshll.u32 [#allocation11], 4
      %s77 = int_to_ptr.vmem [resolvable:$true] %s76
      %82 = dma.hbm_to_vmem [thread:$0]  %s5, 1024, %s77, [#allocation12], 64, 64, 4
    $region25: #{tpu_custom_call.1} parent=1 // pred_fallthru
      _
    // Predicated region
    $region26: #{tpu_custom_call.1} parent=1 // pred_check
      _
    $region27: #{tpu_custom_call.1} parent=1 // pred_check_branch
      %84 = sbr.rel (0) target = $region29
    $region28: #{tpu_custom_call.1} parent=1 // pred_region
      %s86 = ssub.s32 16, 16
      %87 = vsyncadd [#allocation12], %s86
      %s89 = sshll.u32 [#allocation13], 4
      %s90 = int_to_ptr.vmem [resolvable:$true] %s89
      %92 = dma.hbm_to_vmem [thread:$0]  %s6, 16, %s90, [#allocation12]
    $region29: #{tpu_custom_call.1} parent=1 // pred_fallthru
      _
    // Predicated region
    $region30: #{tpu_custom_call.1} parent=1 // pred_check
      _
    $region31: #{tpu_custom_call.1} parent=1 // pred_check_branch
      %94 = sbr.rel (0) target = $region33
    $region32: #{tpu_custom_call.1} parent=1 // pred_region
      %95 = dma.done [#allocation3], 1024
    $region33: #{tpu_custom_call.1} parent=1 // pred_fallthru
      _
    // Predicated region
    $region34: #{tpu_custom_call.1} parent=1 // pred_check
      _
    $region35: #{tpu_custom_call.1} parent=1 // pred_check_branch
      %97 = sbr.rel (0) target = $region37
    $region36: #{tpu_custom_call.1} parent=1 // pred_region
      %98 = dma.done [#allocation6], 8192
    $region37: #{tpu_custom_call.1} parent=1 // pred_fallthru
      _
    // Predicated region
    $region38: #{tpu_custom_call.1} parent=1 // pred_check
      _
    $region39: #{tpu_custom_call.1} parent=1 // pred_check_branch
      %100 = sbr.rel (0) target = $region41
    $region40: #{tpu_custom_call.1} parent=1 // pred_region
      %101 = dma.done [#allocation6], 16
    $region41: #{tpu_custom_call.1} parent=1 // pred_fallthru
      _
    // Predicated region
    $region42: #{tpu_custom_call.1} parent=1 // pred_check
      _
    $region43: #{tpu_custom_call.1} parent=1 // pred_check_branch
      %103 = sbr.rel (0) target = $region45
    $region44: #{tpu_custom_call.1} parent=1 // pred_region
      %104 = dma.done [#allocation9], 1024
    $region45: #{tpu_custom_call.1} parent=1 // pred_fallthru
      _
    // Predicated region
    $region46: #{tpu_custom_call.1} parent=1 // pred_check
      _
    $region47: #{tpu_custom_call.1} parent=1 // pred_check_branch
      %106 = sbr.rel (0) target = $region49
    $region48: #{tpu_custom_call.1} parent=1 // pred_region
      %107 = dma.done [#allocation9], 16
    $region49: #{tpu_custom_call.1} parent=1 // pred_fallthru
      _
    // Predicated region
    $region50: #{tpu_custom_call.1} parent=1 // pred_check
      _
    $region51: #{tpu_custom_call.1} parent=1 // pred_check_branch
      %109 = sbr.rel (0) target = $region53
    $region52: #{tpu_custom_call.1} parent=1 // pred_region
      %110 = dma.done [#allocation12], 1024
    $region53: #{tpu_custom_call.1} parent=1 // pred_fallthru
      _
    // Predicated region
    $region54: #{tpu_custom_call.1} parent=1 // pred_check
      _
    $region55: #{tpu_custom_call.1} parent=1 // pred_check_branch
      %112 = sbr.rel (0) target = $region57
    $region56: #{tpu_custom_call.1} parent=1 // pred_region
      %113 = dma.done [#allocation12], 16
    $region57: #{tpu_custom_call.1} parent=1 // pred_fallthru
      _
    %v115 = vld [vmem:[#allocation2] sm:$0xff]
    %v116 = vld [vmem:[#allocation2 + $0x8] sm:$0xff]
    %v117 = vld [vmem:[#allocation2 + $0x10] sm:$0xff]
    %v118 = vld [vmem:[#allocation2 + $0x18] sm:$0xff]
    %v119 = vld [vmem:[#allocation2 + $0x20] sm:$0xff]
    %v120 = vld [vmem:[#allocation2 + $0x28] sm:$0xff]
    %v121 = vld [vmem:[#allocation2 + $0x30] sm:$0xff]
    %v122 = vld [vmem:[#allocation2 + $0x38] sm:$0xff]
    %v123 = vpack.c.bf16 %v115, %v115
    %v124 = vpack.c.bf16 %v116, %v116
    %v125 = vpack.c.bf16 %v117, %v117
    %v126 = vpack.c.bf16 %v118, %v118
    %v127 = vpack.c.bf16 %v119, %v119
    %v128 = vpack.c.bf16 %v120, %v120
    %v129 = vpack.c.bf16 %v121, %v121
    %v130 = vpack.c.bf16 %v122, %v122
    %v131 = vld [vmem:[#allocation5] sm:$0xf]
    %v132 = vld [vmem:[#allocation5 + $0x4] sm:$0xf]
    %v133 = vld [vmem:[#allocation5 + $0x8] sm:$0xf]
    %v134 = vld [vmem:[#allocation5 + $0xc] sm:$0xf]
    %v135 = vld [vmem:[#allocation5 + $0x10] sm:$0xf]
    %v136 = vld [vmem:[#allocation5 + $0x14] sm:$0xf]
    %v137 = vld [vmem:[#allocation5 + $0x18] sm:$0xf]
    %v138 = vld [vmem:[#allocation5 + $0x1c] sm:$0xf]
    %v139 = vld [vmem:[#allocation5 + $0x20] sm:$0xf]
    %v140 = vld [vmem:[#allocation5 + $0x24] sm:$0xf]
    %v141 = vld [vmem:[#allocation5 + $0x28] sm:$0xf]
    %v142 = vld [vmem:[#allocation5 + $0x2c] sm:$0xf]
    %v143 = vld [vmem:[#allocation5 + $0x30] sm:$0xf]
    %v144 = vld [vmem:[#allocation5 + $0x34] sm:$0xf]
    %v145 = vld [vmem:[#allocation5 + $0x38] sm:$0xf]
    %v146 = vld [vmem:[#allocation5 + $0x3c] sm:$0xf]
    %v147 = vld [vmem:[#allocation5 + $0x40] sm:$0xf]
    %v148 = vld [vmem:[#allocation5 + $0x44] sm:$0xf]
    %v149 = vld [vmem:[#allocation5 + $0x48] sm:$0xf]
    %v150 = vld [vmem:[#allocation5 + $0x4c] sm:$0xf]
    %v151 = vld [vmem:[#allocation5 + $0x50] sm:$0xf]
    %v152 = vld [vmem:[#allocation5 + $0x54] sm:$0xf]
    %v153 = vld [vmem:[#allocation5 + $0x58] sm:$0xf]
    %v154 = vld [vmem:[#allocation5 + $0x5c] sm:$0xf]
    %v155 = vld [vmem:[#allocation5 + $0x60] sm:$0xf]
    %v156 = vld [vmem:[#allocation5 + $0x64] sm:$0xf]
    %v157 = vld [vmem:[#allocation5 + $0x68] sm:$0xf]
    %v158 = vld [vmem:[#allocation5 + $0x6c] sm:$0xf]
    %v159 = vld [vmem:[#allocation5 + $0x70] sm:$0xf]
    %v160 = vld [vmem:[#allocation5 + $0x74] sm:$0xf]
    %v161 = vld [vmem:[#allocation5 + $0x78] sm:$0xf]
    %v162 = vld [vmem:[#allocation5 + $0x7c] sm:$0xf]
    %v163 = vld [vmem:[#allocation5 + $0x80] sm:$0xf]
    %v164 = vld [vmem:[#allocation5 + $0x84] sm:$0xf]
    %v165 = vld [vmem:[#allocation5 + $0x88] sm:$0xf]
    %v166 = vld [vmem:[#allocation5 + $0x8c] sm:$0xf]
    %v167 = vld [vmem:[#allocation5 + $0x90] sm:$0xf]
    %v168 = vld [vmem:[#allocation5 + $0x94] sm:$0xf]
    %v169 = vld [vmem:[#allocation5 + $0x98] sm:$0xf]
    %v170 = vld [vmem:[#allocation5 + $0x9c] sm:$0xf]
    %v171 = vld [vmem:[#allocation5 + $0xa0] sm:$0xf]
    %v172 = vld [vmem:[#allocation5 + $0xa4] sm:$0xf]
    %v173 = vld [vmem:[#allocation5 + $0xa8] sm:$0xf]
    %v174 = vld [vmem:[#allocation5 + $0xac] sm:$0xf]
    %v175 = vld [vmem:[#allocation5 + $0xb0] sm:$0xf]
    %v176 = vld [vmem:[#allocation5 + $0xb4] sm:$0xf]
    %v177 = vld [vmem:[#allocation5 + $0xb8] sm:$0xf]
    %v178 = vld [vmem:[#allocation5 + $0xbc] sm:$0xf]
    %v179 = vld [vmem:[#allocation5 + $0xc0] sm:$0xf]
    %v180 = vld [vmem:[#allocation5 + $0xc4] sm:$0xf]
    %v181 = vld [vmem:[#allocation5 + $0xc8] sm:$0xf]
    %v182 = vld [vmem:[#allocation5 + $0xcc] sm:$0xf]
    %v183 = vld [vmem:[#allocation5 + $0xd0] sm:$0xf]
    %v184 = vld [vmem:[#allocation5 + $0xd4] sm:$0xf]
    %v185 = vld [vmem:[#allocation5 + $0xd8] sm:$0xf]
    %v186 = vld [vmem:[#allocation5 + $0xdc] sm:$0xf]
    %v187 = vld [vmem:[#allocation5 + $0xe0] sm:$0xf]
    %v188 = vld [vmem:[#allocation5 + $0xe4] sm:$0xf]
    %v189 = vld [vmem:[#allocation5 + $0xe8] sm:$0xf]
    %v190 = vld [vmem:[#allocation5 + $0xec] sm:$0xf]
    %v191 = vld [vmem:[#allocation5 + $0xf0] sm:$0xf]
    %v192 = vld [vmem:[#allocation5 + $0xf4] sm:$0xf]
    %v193 = vld [vmem:[#allocation5 + $0xf8] sm:$0xf]
    %v194 = vld [vmem:[#allocation5 + $0xfc] sm:$0xf]
    %v195 = vld [vmem:[#allocation5 + $0x100] sm:$0xf]
    %v196 = vld [vmem:[#allocation5 + $0x104] sm:$0xf]
    %v197 = vld [vmem:[#allocation5 + $0x108] sm:$0xf]
    %v198 = vld [vmem:[#allocation5 + $0x10c] sm:$0xf]
    %v199 = vld [vmem:[#allocation5 + $0x110] sm:$0xf]
    %v200 = vld [vmem:[#allocation5 + $0x114] sm:$0xf]
    %v201 = vld [vmem:[#allocation5 + $0x118] sm:$0xf]
    %v202 = vld [vmem:[#allocation5 + $0x11c] sm:$0xf]
    %v203 = vld [vmem:[#allocation5 + $0x120] sm:$0xf]
    %v204 = vld [vmem:[#allocation5 + $0x124] sm:$0xf]
    %v205 = vld [vmem:[#allocation5 + $0x128] sm:$0xf]
    %v206 = vld [vmem:[#allocation5 + $0x12c] sm:$0xf]
    %v207 = vld [vmem:[#allocation5 + $0x130] sm:$0xf]
    %v208 = vld [vmem:[#allocation5 + $0x134] sm:$0xf]
    %v209 = vld [vmem:[#allocation5 + $0x138] sm:$0xf]
    %v210 = vld [vmem:[#allocation5 + $0x13c] sm:$0xf]
    %v211 = vld [vmem:[#allocation5 + $0x140] sm:$0xf]
    %v212 = vld [vmem:[#allocation5 + $0x144] sm:$0xf]
    %v213 = vld [vmem:[#allocation5 + $0x148] sm:$0xf]
    %v214 = vld [vmem:[#allocation5 + $0x14c] sm:$0xf]
    %v215 = vld [vmem:[#allocation5 + $0x150] sm:$0xf]
    %v216 = vld [vmem:[#allocation5 + $0x154] sm:$0xf]
    %v217 = vld [vmem:[#allocation5 + $0x158] sm:$0xf]
    %v218 = vld [vmem:[#allocation5 + $0x15c] sm:$0xf]
    %v219 = vld [vmem:[#allocation5 + $0x160] sm:$0xf]
    %v220 = vld [vmem:[#allocation5 + $0x164] sm:$0xf]
    %v221 = vld [vmem:[#allocation5 + $0x168] sm:$0xf]
    %v222 = vld [vmem:[#allocation5 + $0x16c] sm:$0xf]
    %v223 = vld [vmem:[#allocation5 + $0x170] sm:$0xf]
    %v224 = vld [vmem:[#allocation5 + $0x174] sm:$0xf]
    %v225 = vld [vmem:[#allocation5 + $0x178] sm:$0xf]
    %v226 = vld [vmem:[#allocation5 + $0x17c] sm:$0xf]
    %v227 = vld [vmem:[#allocation5 + $0x180] sm:$0xf]
    %v228 = vld [vmem:[#allocation5 + $0x184] sm:$0xf]
    %v229 = vld [vmem:[#allocation5 + $0x188] sm:$0xf]
    %v230 = vld [vmem:[#allocation5 + $0x18c] sm:$0xf]
    %v231 = vld [vmem:[#allocation5 + $0x190] sm:$0xf]
    %v232 = vld [vmem:[#allocation5 + $0x194] sm:$0xf]
    %v233 = vld [vmem:[#allocation5 + $0x198] sm:$0xf]
    %v234 = vld [vmem:[#allocation5 + $0x19c] sm:$0xf]
    %v235 = vld [vmem:[#allocation5 + $0x1a0] sm:$0xf]
    %v236 = vld [vmem:[#allocation5 + $0x1a4] sm:$0xf]
    %v237 = vld [vmem:[#allocation5 + $0x1a8] sm:$0xf]
    %v238 = vld [vmem:[#allocation5 + $0x1ac] sm:$0xf]
    %v239 = vld [vmem:[#allocation5 + $0x1b0] sm:$0xf]
    %v240 = vld [vmem:[#allocation5 + $0x1b4] sm:$0xf]
    %v241 = vld [vmem:[#allocation5 + $0x1b8] sm:$0xf]
    %v242 = vld [vmem:[#allocation5 + $0x1bc] sm:$0xf]
    %v243 = vld [vmem:[#allocation5 + $0x1c0] sm:$0xf]
    %v244 = vld [vmem:[#allocation5 + $0x1c4] sm:$0xf]
    %v245 = vld [vmem:[#allocation5 + $0x1c8] sm:$0xf]
    %v246 = vld [vmem:[#allocation5 + $0x1cc] sm:$0xf]
    %v247 = vld [vmem:[#allocation5 + $0x1d0] sm:$0xf]
    %v248 = vld [vmem:[#allocation5 + $0x1d4] sm:$0xf]
    %v249 = vld [vmem:[#allocation5 + $0x1d8] sm:$0xf]
    %v250 = vld [vmem:[#allocation5 + $0x1dc] sm:$0xf]
    %v251 = vld [vmem:[#allocation5 + $0x1e0] sm:$0xf]
    %v252 = vld [vmem:[#allocation5 + $0x1e4] sm:$0xf]
    %v253 = vld [vmem:[#allocation5 + $0x1e8] sm:$0xf]
    %v254 = vld [vmem:[#allocation5 + $0x1ec] sm:$0xf]
    %v255 = vld [vmem:[#allocation5 + $0x1f0] sm:$0xf]
    %v256 = vld [vmem:[#allocation5 + $0x1f4] sm:$0xf]
    %v257 = vld [vmem:[#allocation5 + $0x1f8] sm:$0xf]
    %v258 = vld [vmem:[#allocation5 + $0x1fc] sm:$0xf]
    %v259 = vld [vmem:[#allocation7] sm:$0x1]
    %v261 = vlaneseq
    %v262 = vshrl.u32 %v261, 7
    %v263 = vsub.s32 0, %v262
    %v264 = vrot.slane %v259, %v263
    %v394 = vunpack.c.l.b16 %v131
    %v395 = vunpack.c.l.b16 %v132
    %v396 = vunpack.c.l.b16 %v133
    %v397 = vunpack.c.l.b16 %v134
    %v398 = vunpack.c.l.b16 %v135
    %v399 = vunpack.c.l.b16 %v136
    %v400 = vunpack.c.l.b16 %v137
    %v401 = vunpack.c.l.b16 %v138
    %v402 = vunpack.c.l.b16 %v139
    %v403 = vunpack.c.l.b16 %v140
    %v404 = vunpack.c.l.b16 %v141
    %v405 = vunpack.c.l.b16 %v142
    %v406 = vunpack.c.l.b16 %v143
    %v407 = vunpack.c.l.b16 %v144
    %v408 = vunpack.c.l.b16 %v145
    %v409 = vunpack.c.l.b16 %v146
    %v410 = vunpack.c.l.b16 %v147
    %v411 = vunpack.c.l.b16 %v148
    %v412 = vunpack.c.l.b16 %v149
    %v413 = vunpack.c.l.b16 %v150
    %v414 = vunpack.c.l.b16 %v151
    %v415 = vunpack.c.l.b16 %v152
    %v416 = vunpack.c.l.b16 %v153
    %v417 = vunpack.c.l.b16 %v154
    %v418 = vunpack.c.l.b16 %v155
    %v419 = vunpack.c.l.b16 %v156
    %v420 = vunpack.c.l.b16 %v157
    %v421 = vunpack.c.l.b16 %v158
    %v422 = vunpack.c.l.b16 %v159
    %v423 = vunpack.c.l.b16 %v160
    %v424 = vunpack.c.l.b16 %v161
    %v425 = vunpack.c.l.b16 %v162
    %v426 = vunpack.c.l.b16 %v163
    %v427 = vunpack.c.l.b16 %v164
    %v428 = vunpack.c.l.b16 %v165
    %v429 = vunpack.c.l.b16 %v166
    %v430 = vunpack.c.l.b16 %v167
    %v431 = vunpack.c.l.b16 %v168
    %v432 = vunpack.c.l.b16 %v169
    %v433 = vunpack.c.l.b16 %v170
    %v434 = vunpack.c.l.b16 %v171
    %v435 = vunpack.c.l.b16 %v172
    %v436 = vunpack.c.l.b16 %v173
    %v437 = vunpack.c.l.b16 %v174
    %v438 = vunpack.c.l.b16 %v175
    %v439 = vunpack.c.l.b16 %v176
    %v440 = vunpack.c.l.b16 %v177
    %v441 = vunpack.c.l.b16 %v178
    %v442 = vunpack.c.l.b16 %v179
    %v443 = vunpack.c.l.b16 %v180
    %v444 = vunpack.c.l.b16 %v181
    %v445 = vunpack.c.l.b16 %v182
    %v446 = vunpack.c.l.b16 %v183
    %v447 = vunpack.c.l.b16 %v184
    %v448 = vunpack.c.l.b16 %v185
    %v449 = vunpack.c.l.b16 %v186
    %v450 = vunpack.c.l.b16 %v187
    %v451 = vunpack.c.l.b16 %v188
    %v452 = vunpack.c.l.b16 %v189
    %v453 = vunpack.c.l.b16 %v190
    %v454 = vunpack.c.l.b16 %v191
    %v455 = vunpack.c.l.b16 %v192
    %v456 = vunpack.c.l.b16 %v193
    %v457 = vunpack.c.l.b16 %v194
    %v458 = vunpack.c.l.b16 %v195
    %v459 = vunpack.c.l.b16 %v196
    %v460 = vunpack.c.l.b16 %v197
    %v461 = vunpack.c.l.b16 %v198
    %v462 = vunpack.c.l.b16 %v199
    %v463 = vunpack.c.l.b16 %v200
    %v464 = vunpack.c.l.b16 %v201
    %v465 = vunpack.c.l.b16 %v202
    %v466 = vunpack.c.l.b16 %v203
    %v467 = vunpack.c.l.b16 %v204
    %v468 = vunpack.c.l.b16 %v205
    %v469 = vunpack.c.l.b16 %v206
    %v470 = vunpack.c.l.b16 %v207
    %v471 = vunpack.c.l.b16 %v208
    %v472 = vunpack.c.l.b16 %v209
    %v473 = vunpack.c.l.b16 %v210
    %v474 = vunpack.c.l.b16 %v211
    %v475 = vunpack.c.l.b16 %v212
    %v476 = vunpack.c.l.b16 %v213
    %v477 = vunpack.c.l.b16 %v214
    %v478 = vunpack.c.l.b16 %v215
    %v479 = vunpack.c.l.b16 %v216
    %v480 = vunpack.c.l.b16 %v217
    %v481 = vunpack.c.l.b16 %v218
    %v482 = vunpack.c.l.b16 %v219
    %v483 = vunpack.c.l.b16 %v220
    %v484 = vunpack.c.l.b16 %v221
    %v485 = vunpack.c.l.b16 %v222
    %v486 = vunpack.c.l.b16 %v223
    %v487 = vunpack.c.l.b16 %v224
    %v488 = vunpack.c.l.b16 %v225
    %v489 = vunpack.c.l.b16 %v226
    %v490 = vunpack.c.l.b16 %v227
    %v491 = vunpack.c.l.b16 %v228
    %v492 = vunpack.c.l.b16 %v229
    %v493 = vunpack.c.l.b16 %v230
    %v494 = vunpack.c.l.b16 %v231
    %v495 = vunpack.c.l.b16 %v232
    %v496 = vunpack.c.l.b16 %v233
    %v497 = vunpack.c.l.b16 %v234
    %v498 = vunpack.c.l.b16 %v235
    %v499 = vunpack.c.l.b16 %v236
    %v500 = vunpack.c.l.b16 %v237
    %v501 = vunpack.c.l.b16 %v238
    %v502 = vunpack.c.l.b16 %v239
    %v503 = vunpack.c.l.b16 %v240
    %v504 = vunpack.c.l.b16 %v241
    %v505 = vunpack.c.l.b16 %v242
    %v506 = vunpack.c.l.b16 %v243
    %v507 = vunpack.c.l.b16 %v244
    %v508 = vunpack.c.l.b16 %v245
    %v509 = vunpack.c.l.b16 %v246
    %v510 = vunpack.c.l.b16 %v247
    %v511 = vunpack.c.l.b16 %v248
    %v512 = vunpack.c.l.b16 %v249
    %v513 = vunpack.c.l.b16 %v250
    %v514 = vunpack.c.l.b16 %v251
    %v515 = vunpack.c.l.b16 %v252
    %v516 = vunpack.c.l.b16 %v253
    %v517 = vunpack.c.l.b16 %v254
    %v518 = vunpack.c.l.b16 %v255
    %v519 = vunpack.c.l.b16 %v256
    %v520 = vunpack.c.l.b16 %v257
    %v521 = vunpack.c.l.b16 %v258
    %v522 = vpack.c.b16 %v395, %v394
    %v523 = vpack.c.b16 %v397, %v396
    %v524 = vpack.c.b16 %v399, %v398
    %v525 = vpack.c.b16 %v401, %v400
    %v526 = vpack.c.b16 %v403, %v402
    %v527 = vpack.c.b16 %v405, %v404
    %v528 = vpack.c.b16 %v407, %v406
    %v529 = vpack.c.b16 %v409, %v408
    %v530 = vpack.c.b16 %v411, %v410
    %v531 = vpack.c.b16 %v413, %v412
    %v532 = vpack.c.b16 %v415, %v414
    %v533 = vpack.c.b16 %v417, %v416
    %v534 = vpack.c.b16 %v419, %v418
    %v535 = vpack.c.b16 %v421, %v420
    %v536 = vpack.c.b16 %v423, %v422
    %v537 = vpack.c.b16 %v425, %v424
    %v538 = vpack.c.b16 %v427, %v426
    %v539 = vpack.c.b16 %v429, %v428
    %v540 = vpack.c.b16 %v431, %v430
    %v541 = vpack.c.b16 %v433, %v432
    %v542 = vpack.c.b16 %v435, %v434
    %v543 = vpack.c.b16 %v437, %v436
    %v544 = vpack.c.b16 %v439, %v438
    %v545 = vpack.c.b16 %v441, %v440
    %v546 = vpack.c.b16 %v443, %v442
    %v547 = vpack.c.b16 %v445, %v444
    %v548 = vpack.c.b16 %v447, %v446
    %v549 = vpack.c.b16 %v449, %v448
    %v550 = vpack.c.b16 %v451, %v450
    %v551 = vpack.c.b16 %v453, %v452
    %v552 = vpack.c.b16 %v455, %v454
    %v553 = vpack.c.b16 %v457, %v456
    %v554 = vpack.c.b16 %v459, %v458
    %v555 = vpack.c.b16 %v461, %v460
    %v556 = vpack.c.b16 %v463, %v462
    %v557 = vpack.c.b16 %v465, %v464
    %v558 = vpack.c.b16 %v467, %v466
    %v559 = vpack.c.b16 %v469, %v468
    %v560 = vpack.c.b16 %v471, %v470
    %v561 = vpack.c.b16 %v473, %v472
    %v562 = vpack.c.b16 %v475, %v474
    %v563 = vpack.c.b16 %v477, %v476
    %v564 = vpack.c.b16 %v479, %v478
    %v565 = vpack.c.b16 %v481, %v480
    %v566 = vpack.c.b16 %v483, %v482
    %v567 = vpack.c.b16 %v485, %v484
    %v568 = vpack.c.b16 %v487, %v486
    %v569 = vpack.c.b16 %v489, %v488
    %v570 = vpack.c.b16 %v491, %v490
    %v571 = vpack.c.b16 %v493, %v492
    %v572 = vpack.c.b16 %v495, %v494
    %v573 = vpack.c.b16 %v497, %v496
    %v574 = vpack.c.b16 %v499, %v498
    %v575 = vpack.c.b16 %v501, %v500
    %v576 = vpack.c.b16 %v503, %v502
    %v577 = vpack.c.b16 %v505, %v504
    %v578 = vpack.c.b16 %v507, %v506
    %v579 = vpack.c.b16 %v509, %v508
    %v580 = vpack.c.b16 %v511, %v510
    %v581 = vpack.c.b16 %v513, %v512
    %v582 = vpack.c.b16 %v515, %v514
    %v583 = vpack.c.b16 %v517, %v516
    %v584 = vpack.c.b16 %v519, %v518
    %v585 = vpack.c.b16 %v521, %v520
    %650 = vmatprep.subr.bf16.mxu0 0
    %651 = vmatpush1.bf16.msra.mxu0 %v522
    %652 = vmatprep.subr.bf16.mxu0 0
    %653 = vmatpush1.bf16.msra.mxu0 %v523
    %654 = vmatprep.subr.bf16.mxu0 0
    %655 = vmatpush1.bf16.msra.mxu0 %v524
    %656 = vmatprep.subr.bf16.mxu0 0
    %657 = vmatpush1.bf16.msra.mxu0 %v525
    %658 = vmatprep.subr.bf16.mxu0 0
    %659 = vmatpush1.bf16.msra.mxu0 %v526
    %660 = vmatprep.subr.bf16.mxu0 0
    %661 = vmatpush1.bf16.msra.mxu0 %v527
    %662 = vmatprep.subr.bf16.mxu0 0
    %663 = vmatpush1.bf16.msra.mxu0 %v528
    %664 = vmatprep.subr.bf16.mxu0 0
    %665 = vmatpush1.bf16.msra.mxu0 %v529
    %666 = vmatprep.subr.bf16.mxu0 0
    %667 = vmatpush1.bf16.msra.mxu0 %v530
    %668 = vmatprep.subr.bf16.mxu0 0
    %669 = vmatpush1.bf16.msra.mxu0 %v531
    %670 = vmatprep.subr.bf16.mxu0 0
    %671 = vmatpush1.bf16.msra.mxu0 %v532
    %672 = vmatprep.subr.bf16.mxu0 0
    %673 = vmatpush1.bf16.msra.mxu0 %v533
    %674 = vmatprep.subr.bf16.mxu0 0
    %675 = vmatpush1.bf16.msra.mxu0 %v534
    %676 = vmatprep.subr.bf16.mxu0 0
    %677 = vmatpush1.bf16.msra.mxu0 %v535
    %678 = vmatprep.subr.bf16.mxu0 0
    %679 = vmatpush1.bf16.msra.mxu0 %v536
    %680 = vmatprep.subr.bf16.mxu0 0
    %681 = vmatpush1.bf16.msra.mxu0 %v537
    %682 = vmatprep.mubr.bf16.mxu0 %v124
    %683 = vmatmul.mubr.bf16.gmra.mrb[0].mxu0 %v123
    %v684 = vpop.f32.mrb[0].mxu0
    %v685 = vadd.f32 %v264, %v684
    %v686 = vpop.f32.mrb[0].mxu0
    %v687 = vpop.f32.mrb[0].mxu0
    %v688 = vpop.f32.mrb[0].mxu0
    %689 = vdwg.mxu0
    %690 = vmatprep.subr.bf16.mxu0 0
    %691 = vmatpush1.bf16.msra.mxu0 %v538
    %692 = vmatprep.subr.bf16.mxu0 0
    %693 = vmatpush1.bf16.msra.mxu0 %v539
    %694 = vmatprep.subr.bf16.mxu0 0
    %695 = vmatpush1.bf16.msra.mxu0 %v540
    %696 = vmatprep.subr.bf16.mxu0 0
    %697 = vmatpush1.bf16.msra.mxu0 %v541
    %698 = vmatprep.subr.bf16.mxu0 0
    %699 = vmatpush1.bf16.msra.mxu0 %v542
    %700 = vmatprep.subr.bf16.mxu0 0
    %701 = vmatpush1.bf16.msra.mxu0 %v543
    %702 = vmatprep.subr.bf16.mxu0 0
    %703 = vmatpush1.bf16.msra.mxu0 %v544
    %704 = vmatprep.subr.bf16.mxu0 0
    %705 = vmatpush1.bf16.msra.mxu0 %v545
    %706 = vmatprep.subr.bf16.mxu0 0
    %707 = vmatpush1.bf16.msra.mxu0 %v546
    %708 = vmatprep.subr.bf16.mxu0 0
    %709 = vmatpush1.bf16.msra.mxu0 %v547
    %710 = vmatprep.subr.bf16.mxu0 0
    %711 = vmatpush1.bf16.msra.mxu0 %v548
    %712 = vmatprep.subr.bf16.mxu0 0
    %713 = vmatpush1.bf16.msra.mxu0 %v549
    %714 = vmatprep.subr.bf16.mxu0 0
    %715 = vmatpush1.bf16.msra.mxu0 %v550
    %716 = vmatprep.subr.bf16.mxu0 0
    %717 = vmatpush1.bf16.msra.mxu0 %v551
    %718 = vmatprep.subr.bf16.mxu0 0
    %719 = vmatpush1.bf16.msra.mxu0 %v552
    %720 = vmatprep.subr.bf16.mxu0 0
    %721 = vmatpush1.bf16.msra.mxu0 %v553
    %722 = vmatprep.mubr.bf16.mxu0 %v126
    %723 = vmatmul.mubr.bf16.gmra.mrb[0].mxu0 %v125
    %v724 = vpop.f32.mrb[0].mxu0
    %v725 = vadd.f32 %v685, %v724
    %v726 = vpop.f32.mrb[0].mxu0
    %v727 = vpop.f32.mrb[0].mxu0
    %v728 = vpop.f32.mrb[0].mxu0
    %729 = vdwg.mxu0
    %730 = vmatprep.subr.bf16.mxu0 0
    %731 = vmatpush1.bf16.msra.mxu0 %v554
    %732 = vmatprep.subr.bf16.mxu0 0
    %733 = vmatpush1.bf16.msra.mxu0 %v555
    %734 = vmatprep.subr.bf16.mxu0 0
    %735 = vmatpush1.bf16.msra.mxu0 %v556
    %736 = vmatprep.subr.bf16.mxu0 0
    %737 = vmatpush1.bf16.msra.mxu0 %v557
    %738 = vmatprep.subr.bf16.mxu0 0
    %739 = vmatpush1.bf16.msra.mxu0 %v558
    %740 = vmatprep.subr.bf16.mxu0 0
    %741 = vmatpush1.bf16.msra.mxu0 %v559
    %742 = vmatprep.subr.bf16.mxu0 0
    %743 = vmatpush1.bf16.msra.mxu0 %v560
    %744 = vmatprep.subr.bf16.mxu0 0
    %745 = vmatpush1.bf16.msra.mxu0 %v561
    %746 = vmatprep.subr.bf16.mxu0 0
    %747 = vmatpush1.bf16.msra.mxu0 %v562
    %748 = vmatprep.subr.bf16.mxu0 0
    %749 = vmatpush1.bf16.msra.mxu0 %v563
    %750 = vmatprep.subr.bf16.mxu0 0
    %751 = vmatpush1.bf16.msra.mxu0 %v564
    %752 = vmatprep.subr.bf16.mxu0 0
    %753 = vmatpush1.bf16.msra.mxu0 %v565
    %754 = vmatprep.subr.bf16.mxu0 0
    %755 = vmatpush1.bf16.msra.mxu0 %v566
    %756 = vmatprep.subr.bf16.mxu0 0
    %757 = vmatpush1.bf16.msra.mxu0 %v567
    %758 = vmatprep.subr.bf16.mxu0 0
    %759 = vmatpush1.bf16.msra.mxu0 %v568
    %760 = vmatprep.subr.bf16.mxu0 0
    %761 = vmatpush1.bf16.msra.mxu0 %v569
    %762 = vmatprep.mubr.bf16.mxu0 %v128
    %763 = vmatmul.mubr.bf16.gmra.mrb[0].mxu0 %v127
    %v764 = vpop.f32.mrb[0].mxu0
    %v765 = vadd.f32 %v725, %v764
    %v766 = vpop.f32.mrb[0].mxu0
    %v767 = vpop.f32.mrb[0].mxu0
    %v768 = vpop.f32.mrb[0].mxu0
    %769 = vdwg.mxu0
    %770 = vmatprep.subr.bf16.mxu0 0
    %771 = vmatpush1.bf16.msra.mxu0 %v570
    %772 = vmatprep.subr.bf16.mxu0 0
    %773 = vmatpush1.bf16.msra.mxu0 %v571
    %774 = vmatprep.subr.bf16.mxu0 0
    %775 = vmatpush1.bf16.msra.mxu0 %v572
    %776 = vmatprep.subr.bf16.mxu0 0
    %777 = vmatpush1.bf16.msra.mxu0 %v573
    %778 = vmatprep.subr.bf16.mxu0 0
    %779 = vmatpush1.bf16.msra.mxu0 %v574
    %780 = vmatprep.subr.bf16.mxu0 0
    %781 = vmatpush1.bf16.msra.mxu0 %v575
    %782 = vmatprep.subr.bf16.mxu0 0
    %783 = vmatpush1.bf16.msra.mxu0 %v576
    %784 = vmatprep.subr.bf16.mxu0 0
    %785 = vmatpush1.bf16.msra.mxu0 %v577
    %786 = vmatprep.subr.bf16.mxu0 0
    %787 = vmatpush1.bf16.msra.mxu0 %v578
    %788 = vmatprep.subr.bf16.mxu0 0
    %789 = vmatpush1.bf16.msra.mxu0 %v579
    %790 = vmatprep.subr.bf16.mxu0 0
    %791 = vmatpush1.bf16.msra.mxu0 %v580
    %792 = vmatprep.subr.bf16.mxu0 0
    %793 = vmatpush1.bf16.msra.mxu0 %v581
    %794 = vmatprep.subr.bf16.mxu0 0
    %795 = vmatpush1.bf16.msra.mxu0 %v582
    %796 = vmatprep.subr.bf16.mxu0 0
    %797 = vmatpush1.bf16.msra.mxu0 %v583
    %798 = vmatprep.subr.bf16.mxu0 0
    %799 = vmatpush1.bf16.msra.mxu0 %v584
    %800 = vmatprep.subr.bf16.mxu0 0
    %801 = vmatpush1.bf16.msra.mxu0 %v585
    %802 = vmatprep.mubr.bf16.mxu0 %v130
    %803 = vmatmul.mubr.bf16.gmra.mrb[0].mxu0 %v129
    %v804 = vpop.f32.mrb[0].mxu0
    %v805 = vadd.f32 %v765, %v804
    %v806 = vpop.f32.mrb[0].mxu0
    %v807 = vpop.f32.mrb[0].mxu0
    %v808 = vpop.f32.mrb[0].mxu0
    %809 = vdwg.mxu0
    %v810 = vmax.f32 %v805, 0.0
    %v811 = vpack.c.bf16 %v810, %v810
    %v812 = vld [vmem:[#allocation8] sm:$0xf]
    %v813 = vld [vmem:[#allocation8 + $0x4] sm:$0xf]
    %v814 = vld [vmem:[#allocation8 + $0x8] sm:$0xf]
    %v815 = vld [vmem:[#allocation8 + $0xc] sm:$0xf]
    %v816 = vld [vmem:[#allocation8 + $0x10] sm:$0xf]
    %v817 = vld [vmem:[#allocation8 + $0x14] sm:$0xf]
    %v818 = vld [vmem:[#allocation8 + $0x18] sm:$0xf]
    %v819 = vld [vmem:[#allocation8 + $0x1c] sm:$0xf]
    %v820 = vld [vmem:[#allocation8 + $0x20] sm:$0xf]
    %v821 = vld [vmem:[#allocation8 + $0x24] sm:$0xf]
    %v822 = vld [vmem:[#allocation8 + $0x28] sm:$0xf]
    %v823 = vld [vmem:[#allocation8 + $0x2c] sm:$0xf]
    %v824 = vld [vmem:[#allocation8 + $0x30] sm:$0xf]
    %v825 = vld [vmem:[#allocation8 + $0x34] sm:$0xf]
    %v826 = vld [vmem:[#allocation8 + $0x38] sm:$0xf]
    %v827 = vld [vmem:[#allocation8 + $0x3c] sm:$0xf]
    %v828 = vld [vmem:[#allocation10] sm:$0x1]
    %v830 = vlaneseq
    %v831 = vshrl.u32 %v830, 7
    %v832 = vsub.s32 0, %v831
    %v833 = vrot.slane %v828, %v832
    %v851 = vunpack.c.l.b16 %v812
    %v852 = vunpack.c.l.b16 %v813
    %v853 = vunpack.c.l.b16 %v814
    %v854 = vunpack.c.l.b16 %v815
    %v855 = vunpack.c.l.b16 %v816
    %v856 = vunpack.c.l.b16 %v817
    %v857 = vunpack.c.l.b16 %v818
    %v858 = vunpack.c.l.b16 %v819
    %v859 = vunpack.c.l.b16 %v820
    %v860 = vunpack.c.l.b16 %v821
    %v861 = vunpack.c.l.b16 %v822
    %v862 = vunpack.c.l.b16 %v823
    %v863 = vunpack.c.l.b16 %v824
    %v864 = vunpack.c.l.b16 %v825
    %v865 = vunpack.c.l.b16 %v826
    %v866 = vunpack.c.l.b16 %v827
    %v867 = vpack.c.b16 %v852, %v851
    %v868 = vpack.c.b16 %v854, %v853
    %v869 = vpack.c.b16 %v856, %v855
    %v870 = vpack.c.b16 %v858, %v857
    %v871 = vpack.c.b16 %v860, %v859
    %v872 = vpack.c.b16 %v862, %v861
    %v873 = vpack.c.b16 %v864, %v863
    %v874 = vpack.c.b16 %v866, %v865
    %883 = vmatprep.subr.bf16.mxu0 0
    %884 = vmatpush1.bf16.msra.mxu0 %v867
    %885 = vmatprep.subr.bf16.mxu0 0
    %886 = vmatpush1.bf16.msra.mxu0 %v868
    %887 = vmatprep.subr.bf16.mxu0 0
    %888 = vmatpush1.bf16.msra.mxu0 %v869
    %889 = vmatprep.subr.bf16.mxu0 0
    %890 = vmatpush1.bf16.msra.mxu0 %v870
    %891 = vmatprep.subr.bf16.mxu0 0
    %892 = vmatpush1.bf16.msra.mxu0 %v871
    %893 = vmatprep.subr.bf16.mxu0 0
    %894 = vmatpush1.bf16.msra.mxu0 %v872
    %895 = vmatprep.subr.bf16.mxu0 0
    %896 = vmatpush1.bf16.msra.mxu0 %v873
    %897 = vmatprep.subr.bf16.mxu0 0
    %898 = vmatpush1.bf16.msra.mxu0 %v874
    %899 = vmatprep.subr.bf16.mxu0 0
    %900 = vmatpush1.bf16.msra.mxu0 0
    %901 = vmatprep.subr.bf16.mxu0 0
    %902 = vmatpush1.bf16.msra.mxu0 0
    %903 = vmatprep.subr.bf16.mxu0 0
    %904 = vmatpush1.bf16.msra.mxu0 0
    %905 = vmatprep.subr.bf16.mxu0 0
    %906 = vmatpush1.bf16.msra.mxu0 0
    %907 = vmatprep.subr.bf16.mxu0 0
    %908 = vmatpush1.bf16.msra.mxu0 0
    %909 = vmatprep.subr.bf16.mxu0 0
    %910 = vmatpush1.bf16.msra.mxu0 0
    %911 = vmatprep.subr.bf16.mxu0 0
    %912 = vmatpush1.bf16.msra.mxu0 0
    %913 = vmatprep.subr.bf16.mxu0 0
    %914 = vmatpush1.bf16.msra.mxu0 0
    %915 = vmatprep.mubr.bf16.mxu0 0
    %916 = vmatmul.mubr.bf16.gmra.mrb[0].mxu0 %v811
    %v917 = vpop.f32.mrb[0].mxu0
    %v918 = vadd.f32 %v833, %v917
    %v919 = vpop.f32.mrb[0].mxu0
    %v920 = vpop.f32.mrb[0].mxu0
    %v921 = vpop.f32.mrb[0].mxu0
    %922 = vdwg.mxu0
    %v923 = vmax.f32 %v918, 0.0
    %v924 = vpack.c.bf16 %v923, %v923
    %v925 = vld [vmem:[#allocation11] sm:$0xf]
    %v926 = vld [vmem:[#allocation11 + $0x4] sm:$0xf]
    %v927 = vld [vmem:[#allocation11 + $0x8] sm:$0xf]
    %v928 = vld [vmem:[#allocation11 + $0xc] sm:$0xf]
    %v929 = vld [vmem:[#allocation11 + $0x10] sm:$0xf]
    %v930 = vld [vmem:[#allocation11 + $0x14] sm:$0xf]
    %v931 = vld [vmem:[#allocation11 + $0x18] sm:$0xf]
    %v932 = vld [vmem:[#allocation11 + $0x1c] sm:$0xf]
    %v933 = vld [vmem:[#allocation11 + $0x20] sm:$0xf]
    %v934 = vld [vmem:[#allocation11 + $0x24] sm:$0xf]
    %v935 = vld [vmem:[#allocation11 + $0x28] sm:$0xf]
    %v936 = vld [vmem:[#allocation11 + $0x2c] sm:$0xf]
    %v937 = vld [vmem:[#allocation11 + $0x30] sm:$0xf]
    %v938 = vld [vmem:[#allocation11 + $0x34] sm:$0xf]
    %v939 = vld [vmem:[#allocation11 + $0x38] sm:$0xf]
    %v940 = vld [vmem:[#allocation11 + $0x3c] sm:$0xf]
    %v941 = vld [vmem:[#allocation13] sm:$0x1]
    %v943 = vlaneseq
    %v944 = vshrl.u32 %v943, 7
    %v945 = vsub.s32 0, %v944
    %v946 = vrot.slane %v941, %v945
    %v964 = vunpack.c.l.b16 %v925
    %v965 = vunpack.c.l.b16 %v926
    %v966 = vunpack.c.l.b16 %v927
    %v967 = vunpack.c.l.b16 %v928
    %v968 = vunpack.c.l.b16 %v929
    %v969 = vunpack.c.l.b16 %v930
    %v970 = vunpack.c.l.b16 %v931
    %v971 = vunpack.c.l.b16 %v932
    %v972 = vunpack.c.l.b16 %v933
    %v973 = vunpack.c.l.b16 %v934
    %v974 = vunpack.c.l.b16 %v935
    %v975 = vunpack.c.l.b16 %v936
    %v976 = vunpack.c.l.b16 %v937
    %v977 = vunpack.c.l.b16 %v938
    %v978 = vunpack.c.l.b16 %v939
    %v979 = vunpack.c.l.b16 %v940
    %v980 = vpack.c.b16 %v965, %v964
    %v981 = vpack.c.b16 %v967, %v966
    %v982 = vpack.c.b16 %v969, %v968
    %v983 = vpack.c.b16 %v971, %v970
    %v984 = vpack.c.b16 %v973, %v972
    %v985 = vpack.c.b16 %v975, %v974
    %v986 = vpack.c.b16 %v977, %v976
    %v987 = vpack.c.b16 %v979, %v978
    %996 = vmatprep.subr.bf16.mxu0 0
    %997 = vmatpush1.bf16.msra.mxu0 %v980
    %998 = vmatprep.subr.bf16.mxu0 0
    %999 = vmatpush1.bf16.msra.mxu0 %v981
    %1000 = vmatprep.subr.bf16.mxu0 0
    %1001 = vmatpush1.bf16.msra.mxu0 %v982
    %1002 = vmatprep.subr.bf16.mxu0 0
    %1003 = vmatpush1.bf16.msra.mxu0 %v983
    %1004 = vmatprep.subr.bf16.mxu0 0
    %1005 = vmatpush1.bf16.msra.mxu0 %v984
    %1006 = vmatprep.subr.bf16.mxu0 0
    %1007 = vmatpush1.bf16.msra.mxu0 %v985
    %1008 = vmatprep.subr.bf16.mxu0 0
    %1009 = vmatpush1.bf16.msra.mxu0 %v986
    %1010 = vmatprep.subr.bf16.mxu0 0
    %1011 = vmatpush1.bf16.msra.mxu0 %v987
    %1012 = vmatprep.subr.bf16.mxu0 0
    %1013 = vmatpush1.bf16.msra.mxu0 0
    %1014 = vmatprep.subr.bf16.mxu0 0
    %1015 = vmatpush1.bf16.msra.mxu0 0
    %1016 = vmatprep.subr.bf16.mxu0 0
    %1017 = vmatpush1.bf16.msra.mxu0 0
    %1018 = vmatprep.subr.bf16.mxu0 0
    %1019 = vmatpush1.bf16.msra.mxu0 0
    %1020 = vmatprep.subr.bf16.mxu0 0
    %1021 = vmatpush1.bf16.msra.mxu0 0
    %1022 = vmatprep.subr.bf16.mxu0 0
    %1023 = vmatpush1.bf16.msra.mxu0 0
    %1024 = vmatprep.subr.bf16.mxu0 0
    %1025 = vmatpush1.bf16.msra.mxu0 0
    %1026 = vmatprep.subr.bf16.mxu0 0
    %1027 = vmatpush1.bf16.msra.mxu0 0
    %1028 = vmatprep.mubr.bf16.mxu0 0
    %1029 = vmatmul.mubr.bf16.gmra.mrb[0].mxu0 %v924
    %v1030 = vpop.f32.mrb[0].mxu0
    %v1031 = vadd.f32 %v946, %v1030
    %v1032 = vpop.f32.mrb[0].mxu0
    %v1033 = vpop.f32.mrb[0].mxu0
    %v1034 = vpop.f32.mrb[0].mxu0
    %1035 = vdwg.mxu0
    %1036 = vst [vmem:[#allocation14] sm:$0xff] %v1031
    // Predicated region
    $region58: #{tpu_custom_call.1} parent=1 // pred_check
      _
    $region59: #{tpu_custom_call.1} parent=1 // pred_check_branch
      %1038 = sbr.rel (0) target = $region61
    $region60: #{tpu_custom_call.1} parent=1 // pred_region
      %s1040 = ssub.s32 128, 128
      %1041 = vsyncadd [#allocation4], %s1040
      %s1043 = sshll.u32 [#allocation14], 4
      %s1044 = int_to_ptr.vmem [resolvable:$true] %s1043
      %1046 = dma.vmem_to_hbm [thread:$0]  %s1044, 128, %s7, [#allocation4]
    $region61: #{tpu_custom_call.1} parent=1 // pred_fallthru
      _
    // Predicated region
    $region62: #{tpu_custom_call.1} parent=1 // pred_check
      _
    $region63: #{tpu_custom_call.1} parent=1 // pred_check_branch
      %1048 = sbr.rel (0) target = $region65
    $region64: #{tpu_custom_call.1} parent=1 // pred_region
      %1049 = dma.done [#allocation4], 128
    $region65: #{tpu_custom_call.1} parent=1 // pred_fallthru
      _
    %1050 = vsyncpa [#allocation3], 1
    %1051 = vsyncpa [#allocation6], 1
    %1052 = vsyncpa [#allocation9], 1
    %1053 = vsyncpa [#allocation12], 1
    %1054 = vsyncpa [#allocation4], 1

</llo_original>
